<compile_context>
chip_gen: v7x
topology: tpu7x:2x2x1
jax: 0.10.0
libtpu: 0.0.40
codegen_flags: <defaults>
</compile_context>

<pallas_src>
import functools
import math

import jax
import jax.numpy as jnp
from jax.experimental import pallas as pl
from jax.experimental.pallas import tpu as pltpu

LANE = 128     # lane width: last-dim multiples
SUBLANE = 8    # sublane width: second-to-last dim multiples (f32)


def _round_up(x, m):
    return ((x + m - 1) // m) * m


def _cdiv(a, b):
    return (a + b - 1) // b


# -----------------------------------------------------------------------------
# Fused kernel: all linear layers + ReLUs in one body
# -----------------------------------------------------------------------------
def _fused_ffnn_kernel(x_ref, *refs, num_linear, compute_dtype, emit_activations):
    # refs = (w_0..w_{L-1}, b_0..b_{L-1}, out_ref[, act_0..act_{L-2}])
    w_refs = refs[:num_linear]
    b_refs = refs[num_linear:2 * num_linear]
    out_ref = refs[2 * num_linear]
    act_refs = refs[2 * num_linear + 1:] if emit_activations else ()

    # Inter-layer activation is carried in compute_dtype (bf16 fast path);
    # weights are already pre-cast, so no in-kernel weight casts.
    h = x_ref[...].astype(compute_dtype)                 # (TB, F_in_p)
    for li in range(num_linear):
        # MXU matmul, always f32 accumulation.
        y = jnp.dot(h, w_refs[li][...], preferred_element_type=jnp.float32)
        y = y + b_refs[li][...]                          # bias add in f32 (VPU)
        if li < num_linear - 1:
            y = jnp.maximum(y, 0.0)                      # ReLU (hidden layers)
            if emit_activations:
                act_refs[li][...] = y.astype(act_refs[li].dtype)
            h = y.astype(compute_dtype)
        else:
            out_ref[...] = y.astype(out_ref.dtype)       # identity output layer


# -----------------------------------------------------------------------------
# Wrapper: pad, build grid/specs, single pallas_call
# -----------------------------------------------------------------------------
def _deep_ffnn_pallas(padded_params, x, *, batch_tile, emit_activations,
                      act_dtype=None, min_tiles=1):
    """Returns (out_padded, [act_padded...]) for padded shapes."""
    batch, f_in = x.shape
    num_linear = len(padded_params)
    compute_dtype = padded_params[0][0].dtype
    in_p = padded_params[0][0].shape[0]
    out_p = padded_params[-1][0].shape[1]
    act_dtype = act_dtype if act_dtype is not None else x.dtype

    # --- balanced batch (sublane) tiling --------------------------------------
    # bf16 packs 16 rows / vreg; keep tiles row-aligned to avoid half-packed
    # sublanes, and balance tiles so padding waste is < one row-group per tile.
    row_align = 16 if compute_dtype == jnp.bfloat16 else SUBLANE
    num_tiles = max(_cdiv(batch, batch_tile), min_tiles)   # min_tiles=2 on v7x
    num_tiles = max(1, min(num_tiles, _cdiv(batch, row_align)))
    tb = _round_up(_cdiv(batch, num_tiles), row_align)
    batch_p = num_tiles * tb
    x_p = jnp.zeros((batch_p, in_p), x.dtype).at[:batch, :f_in].set(x)

    grid = (num_tiles,)
    ws = [w for w, _ in padded_params]
    bs = [b for _, b in padded_params]

    # --- outputs: final output first, then (optionally) per-layer activations -
    out_shapes = [jax.ShapeDtypeStruct((batch_p, out_p), x.dtype)]
    out_specs = [pl.BlockSpec((tb, out_p), lambda i: (i, 0))]
    if emit_activations:
        for li in range(num_linear - 1):
            h_out = padded_params[li][0].shape[1]
            out_shapes.append(jax.ShapeDtypeStruct((batch_p, h_out), act_dtype))
            out_specs.append(pl.BlockSpec((tb, h_out), lambda i: (i, 0)))

    # --- advisory cost estimate ------------------------------------------------
    flops = 2 * batch_p * sum(w.shape[0] * w.shape[1] for w in ws)
    bytes_accessed = (
        x_p.size * x_p.dtype.itemsize
        + sum(w.size * w.dtype.itemsize for w in ws)
        + sum(b.size * b.dtype.itemsize for b in bs)
        + sum(math.prod(s.shape) * jnp.dtype(s.dtype).itemsize for s in out_shapes))

    # --- VMEM budget: resident params + pipelined I/O tiles (+ headroom) -------
    param_bytes = sum(w.size * w.dtype.itemsize for w in ws) \
        + sum(b.size * b.dtype.itemsize for b in bs)
    tile_io_bytes = tb * in_p * x.dtype.itemsize \
        + sum(math.prod(s.shape[1:]) * tb * jnp.dtype(s.dtype).itemsize
              for s in out_shapes)
    max_width = max(w.shape[1] for w in ws)
    interm_bytes = 2 * tb * max_width * 4                      # live f32 y / h
    needed = 2 * param_bytes + 2 * tile_io_bytes + interm_bytes
    vmem_limit = int(min(max(needed * 1.25, 32 * 1024 * 1024), 128 * 1024 * 1024))

    kernel = functools.partial(_fused_ffnn_kernel,
                               num_linear=num_linear,
                               compute_dtype=compute_dtype,
                               emit_activations=emit_activations)

    def _run(single_buffer_params):
        # Inputs: activations tiled along batch; params resident (constant map).
        in_specs = [pl.BlockSpec((tb, in_p), lambda i: (i, 0))]
        pkw = ({"pipeline_mode": pl.Buffered(1)} if single_buffer_params else {})
        in_specs += [pl.BlockSpec(w.shape, lambda i: (0, 0), **pkw) for w in ws]
        in_specs += [pl.BlockSpec(b.shape, lambda i: (0, 0), **pkw) for b in bs]
        return pl.pallas_call(
            kernel,
            out_shape=tuple(out_shapes),
            grid_spec=pltpu.PrefetchScalarGridSpec(
                num_scalar_prefetch=0,
                grid=grid,
                in_specs=in_specs,
                out_specs=tuple(out_specs),
            ),
            compiler_params=pltpu.CompilerParams(
                dimension_semantics=("parallel",),
                vmem_limit_bytes=vmem_limit),
            cost_estimate=pl.CostEstimate(flops=flops,
                                          transcendentals=0,
                                          bytes_accessed=bytes_accessed),
        )(x_p, *ws, *bs)

    try:
        outs = _run(single_buffer_params=True)
    except Exception:
        # pl.Buffered(1) rejected by this jax build -> default double-buffered
        # parameter windows (correctness unaffected, only VMEM footprint).
        outs = _run(single_buffer_params=False)

    return outs[0], list(outs[1:])


# -----------------------------------------------------------------------------
# Deterministic parameter init (mirrors Layer.__init__ semantics)
# -----------------------------------------------------------------------------
def _kaiming_uniform(key, fan_in, fan_out):
    # nn.init.kaiming_uniform_ with nonlinearity='relu': bound = sqrt(6 / fan_in)
    bound = jnp.sqrt(6.0 / fan_in)
    # stored as (in, out) == PyTorch (out, in) transposed
    return jax.random.uniform(key, (fan_in, fan_out), jnp.float32, -bound, bound)


def _xavier_uniform(key, fan_in, fan_out):
    bound = jnp.sqrt(6.0 / (fan_in + fan_out))
    return jax.random.uniform(key, (fan_in, fan_out), jnp.float32, -bound, bound)


def init_deep_ffnn_params(key, input_size, output_size, n_layers, size):
    params = []
    keys = jax.random.split(key, n_layers + 1)
    # in_layer: Linear(input_size, size) + ReLU (kaiming, bias=0)
    params.append((_kaiming_uniform(keys[0], input_size, size),
                   jnp.zeros((size,), jnp.float32)))
    # hidden layers: Linear(size, size) + ReLU
    for i in range(n_layers - 1):
        params.append((_kaiming_uniform(keys[1 + i], size, size),
                       jnp.zeros((size,), jnp.float32)))
    # out_layer: Linear(size, output_size) + Identity (xavier, bias=0)
    params.append((_xavier_uniform(keys[n_layers], size, output_size),
                   jnp.zeros((output_size,), jnp.float32)))
    return params


def prepare_params_for_pallas(params, compute_dtype=jnp.float32):
    """Zero-pad weights/biases to lane-dense shapes and pre-cast weights to the
    MXU operand dtype ONCE, up front (biases stay f32 for the f32 VPU path)."""
    padded = []
    for w, b in params:
        f_in, f_out = w.shape
        f_in_p = _round_up(f_in, LANE)
        f_out_p = _round_up(f_out, LANE)
        w_p = (jnp.zeros((f_in_p, f_out_p), jnp.float32)
               .at[:f_in, :f_out].set(w.astype(jnp.float32))
               .astype(compute_dtype))
        b_p = (jnp.zeros((1, f_out_p), jnp.float32)
               .at[0, :f_out].set(b.astype(jnp.float32)))
        padded.append((w_p, b_p))
    return padded


# -----------------------------------------------------------------------------
# DeepFFNN forward / predict
# -----------------------------------------------------------------------------
def deep_ffnn_predict(padded_params, x, *, output_size, size,
                      batch_tile=256, act_dtype=None, min_tiles=1):
    """Equivalent of DeepFFNN.predict: returns (out, activations)."""
    batch = x.shape[0]
    out_p, acts_p = _deep_ffnn_pallas(padded_params, x,
                                      batch_tile=batch_tile,
                                      emit_activations=True,
                                      act_dtype=act_dtype,
                                      min_tiles=min_tiles)
    out = out_p[:batch, :output_size]
    activations = [a[:batch, :size] for a in acts_p]
    return out, activations


def deep_ffnn_forward(padded_params, x, *, output_size, size,
                      batch_tile=256, min_tiles=1):
    """Equivalent of DeepFFNN.forward: final output only (no activation
    writebacks -> less HBM write traffic and output VMEM than predict)."""
    batch = x.shape[0]
    out_p, _ = _deep_ffnn_pallas(padded_params, x,
                                 batch_tile=batch_tile,
                                 emit_activations=False,
                                 min_tiles=min_tiles)
    return out_p[:batch, :output_size]


# -----------------------------------------------------------------------------
if __name__ == "__main__":
    # Small shapes consistent with the module's forward: x is (batch, input_size).
    batch = 8
    input_size = 16
    output_size = 8
    n_layers = 3      # -> 1 input layer + 2 hidden layers + 1 output layer
    size = 32         # hidden width

    key = jax.random.PRNGKey(0)
    pkey, xkey = jax.random.split(key)

    params = init_deep_ffnn_params(pkey, input_size, output_size, n_layers, size)
    x = jax.random.normal(xkey, (batch, input_size), dtype=jnp.float32)

    # Reference in plain JAX (unpadded) to validate kernel semantics.
    ref = x
    ref_acts = []
    for li, (w, b) in enumerate(params):
        ref = ref @ w + b
        if li != len(params) - 1:
            ref = jnp.maximum(ref, 0.0)
            ref_acts.append(ref)

    # --- f32 path: predict (with per-layer activations), tight tolerance ------
    padded_f32 = prepare_params_for_pallas(params, compute_dtype=jnp.float32)
    out, activations = deep_ffnn_predict(padded_f32, x,
                                         output_size=output_size, size=size)
    out = jax.block_until_ready(out)
    assert out.shape == (batch, output_size)
    assert len(activations) == n_layers
    assert jnp.allclose(out, ref, atol=1e-5, rtol=1e-5)
    for a, ra in zip(activations, ref_acts):
        assert a.shape == ra.shape
        assert jnp.allclose(a, ra, atol=1e-5, rtol=1e-5)

    # --- f32 forward path (no activation outputs) ------------------------------
    out_fwd = jax.block_until_ready(
        deep_ffnn_forward(padded_f32, x, output_size=output_size, size=size))
    assert jnp.allclose(out_fwd, ref, atol=1e-5, rtol=1e-5)

    # --- bf16 MXU-operand path (v5e/v6e/v7x fast path): loose-tolerance check --
    padded_bf16 = prepare_params_for_pallas(params, compute_dtype=jnp.bfloat16)
    out_bf16 = jax.block_until_ready(
        deep_ffnn_forward(padded_bf16, x, output_size=output_size, size=size))
    assert out_bf16.shape == (batch, output_size)
    assert bool(jnp.all(jnp.isfinite(out_bf16)))
    assert jnp.allclose(out_bf16.astype(jnp.float32), ref, atol=0.1, rtol=0.1)

    print("KERNEL_OK")
</pallas_src>

<mosaic_0001>
module attributes {stable_mosaic.version = 11 : i64} {
  func.func @_fused_ffnn_kernel(%arg0: i32, %arg1: memref<8x128xf32, #tpu.memory_space<vmem>>, %arg2: memref<128x128xf32, #tpu.memory_space<vmem>>, %arg3: memref<128x128xf32, #tpu.memory_space<vmem>>, %arg4: memref<128x128xf32, #tpu.memory_space<vmem>>, %arg5: memref<128x128xf32, #tpu.memory_space<vmem>>, %arg6: memref<1x128xf32, #tpu.memory_space<vmem>>, %arg7: memref<1x128xf32, #tpu.memory_space<vmem>>, %arg8: memref<1x128xf32, #tpu.memory_space<vmem>>, %arg9: memref<1x128xf32, #tpu.memory_space<vmem>>, %arg10: memref<8x128xf32, #tpu.memory_space<vmem>>, %arg11: memref<8x128xf32, #tpu.memory_space<vmem>>, %arg12: memref<8x128xf32, #tpu.memory_space<vmem>>, %arg13: memref<8x128xf32, #tpu.memory_space<vmem>>) attributes {dimension_semantics = [#tpu.dimension_semantics<parallel>], iteration_bounds = array<i64: 1>, scalar_prefetch = 0 : i64, scratch_operands = 0 : i64, tpu.core_type = #tpu.core_type<tc>, window_params = [{transform_indices = @transform_0, window_bounds = array<i64: 8, 128>}, {pipeline_mode = #tpu.pipeline_mode<synchronous>, transform_indices = @transform_1, window_bounds = array<i64: 128, 128>}, {pipeline_mode = #tpu.pipeline_mode<synchronous>, transform_indices = @transform_2, window_bounds = array<i64: 128, 128>}, {pipeline_mode = #tpu.pipeline_mode<synchronous>, transform_indices = @transform_3, window_bounds = array<i64: 128, 128>}, {pipeline_mode = #tpu.pipeline_mode<synchronous>, transform_indices = @transform_4, window_bounds = array<i64: 128, 128>}, {pipeline_mode = #tpu.pipeline_mode<synchronous>, transform_indices = @transform_5, window_bounds = array<i64: 1, 128>}, {pipeline_mode = #tpu.pipeline_mode<synchronous>, transform_indices = @transform_6, window_bounds = array<i64: 1, 128>}, {pipeline_mode = #tpu.pipeline_mode<synchronous>, transform_indices = @transform_7, window_bounds = array<i64: 1, 128>}, {pipeline_mode = #tpu.pipeline_mode<synchronous>, transform_indices = @transform_8, window_bounds = array<i64: 1, 128>}, {transform_indices = @transform_9, window_bounds = array<i64: 8, 128>}, {transform_indices = @transform_10, window_bounds = array<i64: 8, 128>}, {transform_indices = @transform_11, window_bounds = array<i64: 8, 128>}, {transform_indices = @transform_12, window_bounds = array<i64: 8, 128>}]} {
    %c0 = arith.constant 0 : index
    %c0_0 = arith.constant 0 : index
    %0 = vector.load %arg1[%c0, %c0_0] : memref<8x128xf32, #tpu.memory_space<vmem>>, vector<8x128xf32>
    %c0_1 = arith.constant 0 : index
    %c0_2 = arith.constant 0 : index
    %1 = vector.load %arg2[%c0_1, %c0_2] : memref<128x128xf32, #tpu.memory_space<vmem>>, vector<128x128xf32>
    %cst = arith.constant dense<0.000000e+00> : vector<8x128xf32>
    %2 = tpu.matmul %0, %1, %cst {dimension_numbers = #tpu.dot_dimension_numbers<[1], [0], [0], [1], [0, 0, 1, 1], [], []>} : vector<8x128xf32>, vector<128x128xf32>, vector<8x128xf32> -> vector<8x128xf32>
    %c0_3 = arith.constant 0 : index
    %c0_4 = arith.constant 0 : index
    %3 = vector.load %arg6[%c0_3, %c0_4] : memref<1x128xf32, #tpu.memory_space<vmem>>, vector<1x128xf32>
    %4 = vector.broadcast %3 : vector<1x128xf32> to vector<8x128xf32>
    %5 = arith.addf %2, %4 : vector<8x128xf32>
    %cst_5 = arith.constant 0.000000e+00 : f32
    %6 = vector.broadcast %cst_5 : f32 to vector<8x128xf32>
    %7 = arith.maximumf %5, %6 : vector<8x128xf32>
    %c0_6 = arith.constant 0 : index
    %c0_7 = arith.constant 0 : index
    %8 = vector.load %arg11[%c0_6, %c0_7] : memref<8x128xf32, #tpu.memory_space<vmem>>, vector<8x128xf32>
    tpu.vector_store %arg11[%c0_6, %c0_7], %7 {strides = array<i32>} : memref<8x128xf32, #tpu.memory_space<vmem>>, vector<8x128xf32>,
    %c0_8 = arith.constant 0 : index
    %c0_9 = arith.constant 0 : index
    %9 = vector.load %arg3[%c0_8, %c0_9] : memref<128x128xf32, #tpu.memory_space<vmem>>, vector<128x128xf32>
    %cst_10 = arith.constant dense<0.000000e+00> : vector<8x128xf32>
    %10 = tpu.matmul %7, %9, %cst_10 {dimension_numbers = #tpu.dot_dimension_numbers<[1], [0], [0], [1], [0, 0, 1, 1], [], []>} : vector<8x128xf32>, vector<128x128xf32>, vector<8x128xf32> -> vector<8x128xf32>
    %c0_11 = arith.constant 0 : index
    %c0_12 = arith.constant 0 : index
    %11 = vector.load %arg7[%c0_11, %c0_12] : memref<1x128xf32, #tpu.memory_space<vmem>>, vector<1x128xf32>
    %12 = vector.broadcast %11 : vector<1x128xf32> to vector<8x128xf32>
    %13 = arith.addf %10, %12 : vector<8x128xf32>
    %cst_13 = arith.constant 0.000000e+00 : f32
    %14 = vector.broadcast %cst_13 : f32 to vector<8x128xf32>
    %15 = arith.maximumf %13, %14 : vector<8x128xf32>
    %c0_14 = arith.constant 0 : index
    %c0_15 = arith.constant 0 : index
    %16 = vector.load %arg12[%c0_14, %c0_15] : memref<8x128xf32, #tpu.memory_space<vmem>>, vector<8x128xf32>
    tpu.vector_store %arg12[%c0_14, %c0_15], %15 {strides = array<i32>} : memref<8x128xf32, #tpu.memory_space<vmem>>, vector<8x128xf32>,
    %c0_16 = arith.constant 0 : index
    %c0_17 = arith.constant 0 : index
    %17 = vector.load %arg4[%c0_16, %c0_17] : memref<128x128xf32, #tpu.memory_space<vmem>>, vector<128x128xf32>
    %cst_18 = arith.constant dense<0.000000e+00> : vector<8x128xf32>
    %18 = tpu.matmul %15, %17, %cst_18 {dimension_numbers = #tpu.dot_dimension_numbers<[1], [0], [0], [1], [0, 0, 1, 1], [], []>} : vector<8x128xf32>, vector<128x128xf32>, vector<8x128xf32> -> vector<8x128xf32>
    %c0_19 = arith.constant 0 : index
    %c0_20 = arith.constant 0 : index
    %19 = vector.load %arg8[%c0_19, %c0_20] : memref<1x128xf32, #tpu.memory_space<vmem>>, vector<1x128xf32>
    %20 = vector.broadcast %19 : vector<1x128xf32> to vector<8x128xf32>
    %21 = arith.addf %18, %20 : vector<8x128xf32>
    %cst_21 = arith.constant 0.000000e+00 : f32
    %22 = vector.broadcast %cst_21 : f32 to vector<8x128xf32>
    %23 = arith.maximumf %21, %22 : vector<8x128xf32>
    %c0_22 = arith.constant 0 : index
    %c0_23 = arith.constant 0 : index
    %24 = vector.load %arg13[%c0_22, %c0_23] : memref<8x128xf32, #tpu.memory_space<vmem>>, vector<8x128xf32>
    tpu.vector_store %arg13[%c0_22, %c0_23], %23 {strides = array<i32>} : memref<8x128xf32, #tpu.memory_space<vmem>>, vector<8x128xf32>,
    %c0_24 = arith.constant 0 : index
    %c0_25 = arith.constant 0 : index
    %25 = vector.load %arg5[%c0_24, %c0_25] : memref<128x128xf32, #tpu.memory_space<vmem>>, vector<128x128xf32>
    %cst_26 = arith.constant dense<0.000000e+00> : vector<8x128xf32>
    %26 = tpu.matmul %23, %25, %cst_26 {dimension_numbers = #tpu.dot_dimension_numbers<[1], [0], [0], [1], [0, 0, 1, 1], [], []>} : vector<8x128xf32>, vector<128x128xf32>, vector<8x128xf32> -> vector<8x128xf32>
    %c0_27 = arith.constant 0 : index
    %c0_28 = arith.constant 0 : index
    %27 = vector.load %arg9[%c0_27, %c0_28] : memref<1x128xf32, #tpu.memory_space<vmem>>, vector<1x128xf32>
    %28 = vector.broadcast %27 : vector<1x128xf32> to vector<8x128xf32>
    %29 = arith.addf %26, %28 : vector<8x128xf32>
    %c0_29 = arith.constant 0 : index
    %c0_30 = arith.constant 0 : index
    %30 = vector.load %arg10[%c0_29, %c0_30] : memref<8x128xf32, #tpu.memory_space<vmem>>, vector<8x128xf32>
    tpu.vector_store %arg10[%c0_29, %c0_30], %29 {strides = array<i32>} : memref<8x128xf32, #tpu.memory_space<vmem>>, vector<8x128xf32>,
    return
  }
  func.func @transform_0(%arg0: i32) -> (i32, i32) {
    %c0_i32 = arith.constant 0 : i32
    %c0_i32_0 = arith.constant 0 : i32
    return %arg0, %c0_i32 : i32, i32
  }
  func.func @transform_1(%arg0: i32) -> (i32, i32) {
    %c0_i32 = arith.constant 0 : i32
    %c0_i32_0 = arith.constant 0 : i32
    %c0_i32_1 = arith.constant 0 : i32
    return %c0_i32, %c0_i32_0 : i32, i32
  }
  func.func @transform_2(%arg0: i32) -> (i32, i32) {
    %c0_i32 = arith.constant 0 : i32
    %c0_i32_0 = arith.constant 0 : i32
    %c0_i32_1 = arith.constant 0 : i32
    return %c0_i32, %c0_i32_0 : i32, i32
  }
  func.func @transform_3(%arg0: i32) -> (i32, i32) {
    %c0_i32 = arith.constant 0 : i32
    %c0_i32_0 = arith.constant 0 : i32
    %c0_i32_1 = arith.constant 0 : i32
    return %c0_i32, %c0_i32_0 : i32, i32
  }
  func.func @transform_4(%arg0: i32) -> (i32, i32) {
    %c0_i32 = arith.constant 0 : i32
    %c0_i32_0 = arith.constant 0 : i32
    %c0_i32_1 = arith.constant 0 : i32
    return %c0_i32, %c0_i32_0 : i32, i32
  }
  func.func @transform_5(%arg0: i32) -> (i32, i32) {
    %c0_i32 = arith.constant 0 : i32
    %c0_i32_0 = arith.constant 0 : i32
    %c0_i32_1 = arith.constant 0 : i32
    return %c0_i32, %c0_i32_0 : i32, i32
  }
  func.func @transform_6(%arg0: i32) -> (i32, i32) {
    %c0_i32 = arith.constant 0 : i32
    %c0_i32_0 = arith.constant 0 : i32
    %c0_i32_1 = arith.constant 0 : i32
    return %c0_i32, %c0_i32_0 : i32, i32
  }
  func.func @transform_7(%arg0: i32) -> (i32, i32) {
    %c0_i32 = arith.constant 0 : i32
    %c0_i32_0 = arith.constant 0 : i32
    %c0_i32_1 = arith.constant 0 : i32
    return %c0_i32, %c0_i32_0 : i32, i32
  }
  func.func @transform_8(%arg0: i32) -> (i32, i32) {
    %c0_i32 = arith.constant 0 : i32
    %c0_i32_0 = arith.constant 0 : i32
    %c0_i32_1 = arith.constant 0 : i32
    return %c0_i32, %c0_i32_0 : i32, i32
  }
  func.func @transform_9(%arg0: i32) -> (i32, i32) {
    %c0_i32 = arith.constant 0 : i32
    %c0_i32_0 = arith.constant 0 : i32
    return %arg0, %c0_i32 : i32, i32
  }
  func.func @transform_10(%arg0: i32) -> (i32, i32) {
    %c0_i32 = arith.constant 0 : i32
    %c0_i32_0 = arith.constant 0 : i32
    return %arg0, %c0_i32 : i32, i32
  }
  func.func @transform_11(%arg0: i32) -> (i32, i32) {
    %c0_i32 = arith.constant 0 : i32
    %c0_i32_0 = arith.constant 0 : i32
    return %arg0, %c0_i32 : i32, i32
  }
  func.func @transform_12(%arg0: i32) -> (i32, i32) {
    %c0_i32 = arith.constant 0 : i32
    %c0_i32_0 = arith.constant 0 : i32
    return %arg0, %c0_i32 : i32, i32
  }
}

module attributes {stable_mosaic.version = 11 : i64} {
  func.func @_fused_ffnn_kernel(%arg0: i32, %arg1: memref<8x128xf32, #tpu.memory_space<vmem>>, %arg2: memref<128x128xf32, #tpu.memory_space<vmem>>, %arg3: memref<128x128xf32, #tpu.memory_space<vmem>>, %arg4: memref<128x128xf32, #tpu.memory_space<vmem>>, %arg5: memref<128x128xf32, #tpu.memory_space<vmem>>, %arg6: memref<1x128xf32, #tpu.memory_space<vmem>>, %arg7: memref<1x128xf32, #tpu.memory_space<vmem>>, %arg8: memref<1x128xf32, #tpu.memory_space<vmem>>, %arg9: memref<1x128xf32, #tpu.memory_space<vmem>>, %arg10: memref<8x128xf32, #tpu.memory_space<vmem>>, %arg11: memref<8x128xf32, #tpu.memory_space<vmem>>, %arg12: memref<8x128xf32, #tpu.memory_space<vmem>>, %arg13: memref<8x128xf32, #tpu.memory_space<vmem>>) attributes {dimension_semantics = [#tpu.dimension_semantics<parallel>], iteration_bounds = array<i64: 1>, scalar_prefetch = 0 : i64, scratch_operands = 0 : i64, tpu.core_type = #tpu.core_type<tc>, window_params = [{transform_indices = @transform_0, window_bounds = array<i64: 8, 128>}, {pipeline_mode = #tpu.pipeline_mode<synchronous>, transform_indices = @transform_1, window_bounds = array<i64: 128, 128>}, {pipeline_mode = #tpu.pipeline_mode<synchronous>, transform_indices = @transform_2, window_bounds = array<i64: 128, 128>}, {pipeline_mode = #tpu.pipeline_mode<synchronous>, transform_indices = @transform_3, window_bounds = array<i64: 128, 128>}, {pipeline_mode = #tpu.pipeline_mode<synchronous>, transform_indices = @transform_4, window_bounds = array<i64: 128, 128>}, {pipeline_mode = #tpu.pipeline_mode<synchronous>, transform_indices = @transform_5, window_bounds = array<i64: 1, 128>}, {pipeline_mode = #tpu.pipeline_mode<synchronous>, transform_indices = @transform_6, window_bounds = array<i64: 1, 128>}, {pipeline_mode = #tpu.pipeline_mode<synchronous>, transform_indices = @transform_7, window_bounds = array<i64: 1, 128>}, {pipeline_mode = #tpu.pipeline_mode<synchronous>, transform_indices = @transform_8, window_bounds = array<i64: 1, 128>}, {transform_indices = @transform_9, window_bounds = array<i64: 8, 128>}, {transform_indices = @transform_10, window_bounds = array<i64: 8, 128>}, {transform_indices = @transform_11, window_bounds = array<i64: 8, 128>}, {transform_indices = @transform_12, window_bounds = array<i64: 8, 128>}]} {
    %c0 = arith.constant 0 : index
    %c0_0 = arith.constant 0 : index
    %0 = vector.load %arg1[%c0, %c0_0] : memref<8x128xf32, #tpu.memory_space<vmem>>, vector<8x128xf32>
    %c0_1 = arith.constant 0 : index
    %c0_2 = arith.constant 0 : index
    %1 = vector.load %arg2[%c0_1, %c0_2] : memref<128x128xf32, #tpu.memory_space<vmem>>, vector<128x128xf32>
    %cst = arith.constant dense<0.000000e+00> : vector<8x128xf32>
    %2 = tpu.matmul %0, %1, %cst {dimension_numbers = #tpu.dot_dimension_numbers<[1], [0], [0], [1], [0, 0, 1, 1], [], []>} : vector<8x128xf32>, vector<128x128xf32>, vector<8x128xf32> -> vector<8x128xf32>
    %c0_3 = arith.constant 0 : index
    %c0_4 = arith.constant 0 : index
    %3 = vector.load %arg6[%c0_3, %c0_4] : memref<1x128xf32, #tpu.memory_space<vmem>>, vector<1x128xf32>
    %4 = vector.broadcast %3 : vector<1x128xf32> to vector<8x128xf32>
    %5 = arith.addf %2, %4 : vector<8x128xf32>
    %cst_5 = arith.constant 0.000000e+00 : f32
    %6 = vector.broadcast %cst_5 : f32 to vector<8x128xf32>
    %7 = arith.maximumf %5, %6 : vector<8x128xf32>
    %c0_6 = arith.constant 0 : index
    %c0_7 = arith.constant 0 : index
    %8 = vector.load %arg11[%c0_6, %c0_7] : memref<8x128xf32, #tpu.memory_space<vmem>>, vector<8x128xf32>
    tpu.vector_store %arg11[%c0_6, %c0_7], %7 {strides = array<i32>} : memref<8x128xf32, #tpu.memory_space<vmem>>, vector<8x128xf32>,
    %c0_8 = arith.constant 0 : index
    %c0_9 = arith.constant 0 : index
    %9 = vector.load %arg3[%c0_8, %c0_9] : memref<128x128xf32, #tpu.memory_space<vmem>>, vector<128x128xf32>
    %cst_10 = arith.constant dense<0.000000e+00> : vector<8x128xf32>
    %10 = tpu.matmul %7, %9, %cst_10 {dimension_numbers = #tpu.dot_dimension_numbers<[1], [0], [0], [1], [0, 0, 1, 1], [], []>} : vector<8x128xf32>, vector<128x128xf32>, vector<8x128xf32> -> vector<8x128xf32>
    %c0_11 = arith.constant 0 : index
    %c0_12 = arith.constant 0 : index
    %11 = vector.load %arg7[%c0_11, %c0_12] : memref<1x128xf32, #tpu.memory_space<vmem>>, vector<1x128xf32>
    %12 = vector.broadcast %11 : vector<1x128xf32> to vector<8x128xf32>
    %13 = arith.addf %10, %12 : vector<8x128xf32>
    %cst_13 = arith.constant 0.000000e+00 : f32
    %14 = vector.broadcast %cst_13 : f32 to vector<8x128xf32>
    %15 = arith.maximumf %13, %14 : vector<8x128xf32>
    %c0_14 = arith.constant 0 : index
    %c0_15 = arith.constant 0 : index
    %16 = vector.load %arg12[%c0_14, %c0_15] : memref<8x128xf32, #tpu.memory_space<vmem>>, vector<8x128xf32>
    tpu.vector_store %arg12[%c0_14, %c0_15], %15 {strides = array<i32>} : memref<8x128xf32, #tpu.memory_space<vmem>>, vector<8x128xf32>,
    %c0_16 = arith.constant 0 : index
    %c0_17 = arith.constant 0 : index
    %17 = vector.load %arg4[%c0_16, %c0_17] : memref<128x128xf32, #tpu.memory_space<vmem>>, vector<128x128xf32>
    %cst_18 = arith.constant dense<0.000000e+00> : vector<8x128xf32>
    %18 = tpu.matmul %15, %17, %cst_18 {dimension_numbers = #tpu.dot_dimension_numbers<[1], [0], [0], [1], [0, 0, 1, 1], [], []>} : vector<8x128xf32>, vector<128x128xf32>, vector<8x128xf32> -> vector<8x128xf32>
    %c0_19 = arith.constant 0 : index
    %c0_20 = arith.constant 0 : index
    %19 = vector.load %arg8[%c0_19, %c0_20] : memref<1x128xf32, #tpu.memory_space<vmem>>, vector<1x128xf32>
    %20 = vector.broadcast %19 : vector<1x128xf32> to vector<8x128xf32>
    %21 = arith.addf %18, %20 : vector<8x128xf32>
    %cst_21 = arith.constant 0.000000e+00 : f32
    %22 = vector.broadcast %cst_21 : f32 to vector<8x128xf32>
    %23 = arith.maximumf %21, %22 : vector<8x128xf32>
    %c0_22 = arith.constant 0 : index
    %c0_23 = arith.constant 0 : index
    %24 = vector.load %arg13[%c0_22, %c0_23] : memref<8x128xf32, #tpu.memory_space<vmem>>, vector<8x128xf32>
    tpu.vector_store %arg13[%c0_22, %c0_23], %23 {strides = array<i32>} : memref<8x128xf32, #tpu.memory_space<vmem>>, vector<8x128xf32>,
    %c0_24 = arith.constant 0 : index
    %c0_25 = arith.constant 0 : index
    %25 = vector.load %arg5[%c0_24, %c0_25] : memref<128x128xf32, #tpu.memory_space<vmem>>, vector<128x128xf32>
    %cst_26 = arith.constant dense<0.000000e+00> : vector<8x128xf32>
    %26 = tpu.matmul %23, %25, %cst_26 {dimension_numbers = #tpu.dot_dimension_numbers<[1], [0], [0], [1], [0, 0, 1, 1], [], []>} : vector<8x128xf32>, vector<128x128xf32>, vector<8x128xf32> -> vector<8x128xf32>
    %c0_27 = arith.constant 0 : index
    %c0_28 = arith.constant 0 : index
    %27 = vector.load %arg9[%c0_27, %c0_28] : memref<1x128xf32, #tpu.memory_space<vmem>>, vector<1x128xf32>
    %28 = vector.broadcast %27 : vector<1x128xf32> to vector<8x128xf32>
    %29 = arith.addf %26, %28 : vector<8x128xf32>
    %c0_29 = arith.constant 0 : index
    %c0_30 = arith.constant 0 : index
    %30 = vector.load %arg10[%c0_29, %c0_30] : memref<8x128xf32, #tpu.memory_space<vmem>>, vector<8x128xf32>
    tpu.vector_store %arg10[%c0_29, %c0_30], %29 {strides = array<i32>} : memref<8x128xf32, #tpu.memory_space<vmem>>, vector<8x128xf32>,
    return
  }
  func.func @transform_0(%arg0: i32) -> (i32, i32) {
    %c0_i32 = arith.constant 0 : i32
    %c0_i32_0 = arith.constant 0 : i32
    return %arg0, %c0_i32 : i32, i32
  }
  func.func @transform_1(%arg0: i32) -> (i32, i32) {
    %c0_i32 = arith.constant 0 : i32
    %c0_i32_0 = arith.constant 0 : i32
    %c0_i32_1 = arith.constant 0 : i32
    return %c0_i32, %c0_i32_0 : i32, i32
  }
  func.func @transform_2(%arg0: i32) -> (i32, i32) {
    %c0_i32 = arith.constant 0 : i32
    %c0_i32_0 = arith.constant 0 : i32
    %c0_i32_1 = arith.constant 0 : i32
    return %c0_i32, %c0_i32_0 : i32, i32
  }
  func.func @transform_3(%arg0: i32) -> (i32, i32) {
    %c0_i32 = arith.constant 0 : i32
    %c0_i32_0 = arith.constant 0 : i32
    %c0_i32_1 = arith.constant 0 : i32
    return %c0_i32, %c0_i32_0 : i32, i32
  }
  func.func @transform_4(%arg0: i32) -> (i32, i32) {
    %c0_i32 = arith.constant 0 : i32
    %c0_i32_0 = arith.constant 0 : i32
    %c0_i32_1 = arith.constant 0 : i32
    return %c0_i32, %c0_i32_0 : i32, i32
  }
  func.func @transform_5(%arg0: i32) -> (i32, i32) {
    %c0_i32 = arith.constant 0 : i32
    %c0_i32_0 = arith.constant 0 : i32
    %c0_i32_1 = arith.constant 0 : i32
    return %c0_i32, %c0_i32_0 : i32, i32
  }
  func.func @transform_6(%arg0: i32) -> (i32, i32) {
    %c0_i32 = arith.constant 0 : i32
    %c0_i32_0 = arith.constant 0 : i32
    %c0_i32_1 = arith.constant 0 : i32
    return %c0_i32, %c0_i32_0 : i32, i32
  }
  func.func @transform_7(%arg0: i32) -> (i32, i32) {
    %c0_i32 = arith.constant 0 : i32
    %c0_i32_0 = arith.constant 0 : i32
    %c0_i32_1 = arith.constant 0 : i32
    return %c0_i32, %c0_i32_0 : i32, i32
  }
  func.func @transform_8(%arg0: i32) -> (i32, i32) {
    %c0_i32 = arith.constant 0 : i32
    %c0_i32_0 = arith.constant 0 : i32
    %c0_i32_1 = arith.constant 0 : i32
    return %c0_i32, %c0_i32_0 : i32, i32
  }
  func.func @transform_9(%arg0: i32) -> (i32, i32) {
    %c0_i32 = arith.constant 0 : i32
    %c0_i32_0 = arith.constant 0 : i32
    return %arg0, %c0_i32 : i32, i32
  }
  func.func @transform_10(%arg0: i32) -> (i32, i32) {
    %c0_i32 = arith.constant 0 : i32
    %c0_i32_0 = arith.constant 0 : i32
    return %arg0, %c0_i32 : i32, i32
  }
  func.func @transform_11(%arg0: i32) -> (i32, i32) {
    %c0_i32 = arith.constant 0 : i32
    %c0_i32_0 = arith.constant 0 : i32
    return %arg0, %c0_i32 : i32, i32
  }
  func.func @transform_12(%arg0: i32) -> (i32, i32) {
    %c0_i32 = arith.constant 0 : i32
    %c0_i32_0 = arith.constant 0 : i32
    return %arg0, %c0_i32 : i32, i32
  }
}

</mosaic_0001>

<llo_original>
// kernel: tpu_custom_call.1
$region0: #{tpu_custom_call.1}
  #allocation0 [shape = 'u32[]', space=smem, size = 0x4, offset = 0x4, fixed_abs, tag = 'smem constant byte address 0x4 - core index']
  #allocation1 [shape = 'u32[144,128]{1,0:T(1,128)}', space=vmem, size = 0x12000, scoped, tag = 'internal scratch']
  %s0 = inlined_call_operand.hbm [shape: f32[8,128], index: 0, kind: input, shape index: {}]
  %s1 = inlined_call_operand.hbm [shape: f32[128,128], index: 1, kind: input, shape index: {}]
  %s2 = inlined_call_operand.hbm [shape: f32[128,128], index: 2, kind: input, shape index: {}]
  %s3 = inlined_call_operand.hbm [shape: f32[128,128], index: 3, kind: input, shape index: {}]
  %s4 = inlined_call_operand.hbm [shape: f32[128,128], index: 4, kind: input, shape index: {}]
  %s5 = inlined_call_operand.vmem [shape: f32[1,128], index: 5, kind: input, shape index: {}]
  %s6 = inlined_call_operand.vmem [shape: f32[1,128], index: 6, kind: input, shape index: {}]
  %s7 = inlined_call_operand.vmem [shape: f32[1,128], index: 7, kind: input, shape index: {}]
  %s8 = inlined_call_operand.vmem [shape: f32[1,128], index: 8, kind: input, shape index: {}]
  %s9 = inlined_call_operand.hbm [shape: f32[8,128], index: 9, kind: output, shape index: {0}]
  %s10 = inlined_call_operand.hbm [shape: f32[8,128], index: 10, kind: output, shape index: {1}]
  %s11 = inlined_call_operand.hbm [shape: f32[8,128], index: 11, kind: output, shape index: {2}]
  %s12 = inlined_call_operand.hbm [shape: f32[8,128], index: 12, kind: output, shape index: {3}]
  %13 = xla_tuple %s9, %s10, %s11, %s12
  %s14 = sld [smem:[#allocation0]]
  $region90: #{tpu_custom_call.1} parent=0
    _
  %s16 = ssub.s32 1, %s14
  %s17 = scalar_select 0, %s16, %s14
  $region1: #{tpu_custom_call.1} parent=0
    #allocation2 [shape = 'u8[4096]{0}', space=vmem, size = 0x1000, scoped, tag = 'input window, operand 0, single buffered']
    #allocation3 [shape = 's32[1]{0}', space=sflag, size = 0x4, scoped, tag = 'scoped memory for tpu_custom_call.1']
    #allocation4 [shape = 's32[1]{0}', space=sflag, size = 0x4, scoped, tag = 'scoped memory for tpu_custom_call.1']
    #allocation5 [shape = 'u8[65536]{0}', space=vmem, size = 0x10000, scoped, tag = 'input window, operand 1, single buffered']
    #allocation6 [shape = 's32[1]{0}', space=sflag, size = 0x4, scoped, tag = 'scoped memory for tpu_custom_call.1']
    #allocation7 [shape = 'u8[65536]{0}', space=vmem, size = 0x10000, scoped, tag = 'input window, operand 2, single buffered']
    #allocation8 [shape = 'u8[65536]{0}', space=vmem, size = 0x10000, scoped, tag = 'input window, operand 3, single buffered']
    #allocation9 [shape = 's32[1]{0}', space=sflag, size = 0x4, scoped, tag = 'scoped memory for tpu_custom_call.1']
    #allocation10 [shape = 'u8[65536]{0}', space=vmem, size = 0x10000, scoped, tag = 'input window, operand 4, single buffered']
    #allocation11 [shape = 'u8[4096]{0}', space=vmem, size = 0x1000, scoped, tag = 'output window, operand 0, single buffered']
    #allocation12 [shape = 'u8[4096]{0}', space=vmem, size = 0x1000, scoped, tag = 'output window, operand 1, single buffered']
    #allocation13 [shape = 's32[1]{0}', space=sflag, size = 0x4, scoped, tag = 'scoped memory for tpu_custom_call.1']
    #allocation14 [shape = 'u8[4096]{0}', space=vmem, size = 0x1000, scoped, tag = 'output window, operand 2, single buffered']
    #allocation15 [shape = 'u8[4096]{0}', space=vmem, size = 0x1000, scoped, tag = 'output window, operand 3, single buffered']
    #allocation16 [shape = 's32[1]{0}', space=sflag, size = 0x4, scoped, tag = 'scoped memory for tpu_custom_call.1']
    %18 = vsyncpa [#allocation3], 0
    %19 = vsyncpa [#allocation6], 0
    %20 = vsyncpa [#allocation9], 0
    %21 = vsyncpa [#allocation4], 0
    %22 = vsyncpa [#allocation13], 0
    %23 = vsyncpa [#allocation16], 0
    // Predicated region
    $region2: #{tpu_custom_call.1} parent=1 // pred_check
      _
    $region3: #{tpu_custom_call.1} parent=1 // pred_check_branch
      %25 = sbr.rel (0) target = $region5
    $region4: #{tpu_custom_call.1} parent=1 // pred_region
      %s27 = ssub.s32 128, 128
      %28 = vsyncadd [#allocation3], %s27
      %s30 = sshll.u32 [#allocation2], 4
      %s31 = int_to_ptr.vmem [resolvable:$true] %s30
      %33 = dma.hbm_to_vmem [thread:$0]  %s0, 128, %s31, [#allocation3]
    $region5: #{tpu_custom_call.1} parent=1 // pred_fallthru
      _
    // Predicated region
    $region6: #{tpu_custom_call.1} parent=1 // pred_check
      _
    $region7: #{tpu_custom_call.1} parent=1 // pred_check_branch
      %35 = sbr.rel (0) target = $region9
    $region8: #{tpu_custom_call.1} parent=1 // pred_region
      %s37 = ssub.s32 2048, 2048
      %38 = vsyncadd [#allocation6], %s37
      %s39 = sshll.u32 [#allocation5], 4
      %s40 = int_to_ptr.vmem [resolvable:$true] %s39
      %45 = dma.hbm_to_vmem [thread:$0]  %s1, 2048, %s40, [#allocation6], 128, 128, 8
    $region9: #{tpu_custom_call.1} parent=1 // pred_fallthru
      _
    // Predicated region
    $region10: #{tpu_custom_call.1} parent=1 // pred_check
      _
    $region11: #{tpu_custom_call.1} parent=1 // pred_check_branch
      %47 = sbr.rel (0) target = $region13
    $region12: #{tpu_custom_call.1} parent=1 // pred_region
      %s49 = ssub.s32 2048, 2048
      %50 = vsyncadd [#allocation6], %s49
      %s51 = sshll.u32 [#allocation7], 4
      %s52 = int_to_ptr.vmem [resolvable:$true] %s51
      %57 = dma.hbm_to_vmem [thread:$0]  %s2, 2048, %s52, [#allocation6], 128, 128, 8
    $region13: #{tpu_custom_call.1} parent=1 // pred_fallthru
      _
    // Predicated region
    $region14: #{tpu_custom_call.1} parent=1 // pred_check
      _
    $region15: #{tpu_custom_call.1} parent=1 // pred_check_branch
      %59 = sbr.rel (0) target = $region17
    $region16: #{tpu_custom_call.1} parent=1 // pred_region
      %s61 = ssub.s32 2048, 2048
      %62 = vsyncadd [#allocation9], %s61
      %s63 = sshll.u32 [#allocation8], 4
      %s64 = int_to_ptr.vmem [resolvable:$true] %s63
      %69 = dma.hbm_to_vmem [thread:$0]  %s3, 2048, %s64, [#allocation9], 128, 128, 8
    $region17: #{tpu_custom_call.1} parent=1 // pred_fallthru
      _
    // Predicated region
    $region18: #{tpu_custom_call.1} parent=1 // pred_check
      _
    $region19: #{tpu_custom_call.1} parent=1 // pred_check_branch
      %71 = sbr.rel (0) target = $region21
    $region20: #{tpu_custom_call.1} parent=1 // pred_region
      %s73 = ssub.s32 2048, 2048
      %74 = vsyncadd [#allocation9], %s73
      %s75 = sshll.u32 [#allocation10], 4
      %s76 = int_to_ptr.vmem [resolvable:$true] %s75
      %81 = dma.hbm_to_vmem [thread:$0]  %s4, 2048, %s76, [#allocation9], 128, 128, 8
    $region21: #{tpu_custom_call.1} parent=1 // pred_fallthru
      _
    // Predicated region
    $region22: #{tpu_custom_call.1} parent=1 // pred_check
      _
    $region23: #{tpu_custom_call.1} parent=1 // pred_check_branch
      %83 = sbr.rel (0) target = $region25
    $region24: #{tpu_custom_call.1} parent=1 // pred_region
      _
    $region25: #{tpu_custom_call.1} parent=1 // pred_fallthru
      _
    // Predicated region
    $region26: #{tpu_custom_call.1} parent=1 // pred_check
      _
    $region27: #{tpu_custom_call.1} parent=1 // pred_check_branch
      %85 = sbr.rel (0) target = $region29
    $region28: #{tpu_custom_call.1} parent=1 // pred_region
      _
    $region29: #{tpu_custom_call.1} parent=1 // pred_fallthru
      _
    // Predicated region
    $region30: #{tpu_custom_call.1} parent=1 // pred_check
      _
    $region31: #{tpu_custom_call.1} parent=1 // pred_check_branch
      %87 = sbr.rel (0) target = $region33
    $region32: #{tpu_custom_call.1} parent=1 // pred_region
      _
    $region33: #{tpu_custom_call.1} parent=1 // pred_fallthru
      _
    // Predicated region
    $region34: #{tpu_custom_call.1} parent=1 // pred_check
      _
    $region35: #{tpu_custom_call.1} parent=1 // pred_check_branch
      %89 = sbr.rel (0) target = $region37
    $region36: #{tpu_custom_call.1} parent=1 // pred_region
      _
    $region37: #{tpu_custom_call.1} parent=1 // pred_fallthru
      _
    // Predicated region
    $region38: #{tpu_custom_call.1} parent=1 // pred_check
      _
    $region39: #{tpu_custom_call.1} parent=1 // pred_check_branch
      %91 = sbr.rel (0) target = $region41
    $region40: #{tpu_custom_call.1} parent=1 // pred_region
      %92 = dma.done [#allocation3], 128
    $region41: #{tpu_custom_call.1} parent=1 // pred_fallthru
      _
    // Predicated region
    $region42: #{tpu_custom_call.1} parent=1 // pred_check
      _
    $region43: #{tpu_custom_call.1} parent=1 // pred_check_branch
      %94 = sbr.rel (0) target = $region45
    $region44: #{tpu_custom_call.1} parent=1 // pred_region
      %95 = dma.done [#allocation6], 2048
    $region45: #{tpu_custom_call.1} parent=1 // pred_fallthru
      _
    // Predicated region
    $region46: #{tpu_custom_call.1} parent=1 // pred_check
      _
    $region47: #{tpu_custom_call.1} parent=1 // pred_check_branch
      %97 = sbr.rel (0) target = $region49
    $region48: #{tpu_custom_call.1} parent=1 // pred_region
      %98 = dma.done [#allocation6], 2048
    $region49: #{tpu_custom_call.1} parent=1 // pred_fallthru
      _
    // Predicated region
    $region50: #{tpu_custom_call.1} parent=1 // pred_check
      _
    $region51: #{tpu_custom_call.1} parent=1 // pred_check_branch
      %100 = sbr.rel (0) target = $region53
    $region52: #{tpu_custom_call.1} parent=1 // pred_region
      %101 = dma.done [#allocation9], 2048
    $region53: #{tpu_custom_call.1} parent=1 // pred_fallthru
      _
    // Predicated region
    $region54: #{tpu_custom_call.1} parent=1 // pred_check
      _
    $region55: #{tpu_custom_call.1} parent=1 // pred_check_branch
      %103 = sbr.rel (0) target = $region57
    $region56: #{tpu_custom_call.1} parent=1 // pred_region
      %104 = dma.done [#allocation9], 2048
    $region57: #{tpu_custom_call.1} parent=1 // pred_fallthru
      _
    %v105 = vld [vmem:[#allocation2] sm:$0xff]
    %v106 = vld [vmem:[#allocation5] sm:$0xff]
    %v107 = vld [vmem:[#allocation5 + $0x8] sm:$0xff]
    %v108 = vld [vmem:[#allocation5 + $0x10] sm:$0xff]
    %v109 = vld [vmem:[#allocation5 + $0x18] sm:$0xff]
    %v110 = vld [vmem:[#allocation5 + $0x20] sm:$0xff]
    %v111 = vld [vmem:[#allocation5 + $0x28] sm:$0xff]
    %v112 = vld [vmem:[#allocation5 + $0x30] sm:$0xff]
    %v113 = vld [vmem:[#allocation5 + $0x38] sm:$0xff]
    %v114 = vld [vmem:[#allocation5 + $0x40] sm:$0xff]
    %v115 = vld [vmem:[#allocation5 + $0x48] sm:$0xff]
    %v116 = vld [vmem:[#allocation5 + $0x50] sm:$0xff]
    %v117 = vld [vmem:[#allocation5 + $0x58] sm:$0xff]
    %v118 = vld [vmem:[#allocation5 + $0x60] sm:$0xff]
    %v119 = vld [vmem:[#allocation5 + $0x68] sm:$0xff]
    %v120 = vld [vmem:[#allocation5 + $0x70] sm:$0xff]
    %v121 = vld [vmem:[#allocation5 + $0x78] sm:$0xff]
    %v122 = vld [vmem:[%s5] sm:$0x1]
    %v124 = vlaneseq
    %v125 = vshrl.u32 %v124, 7
    %v126 = vsub.s32 0, %v125
    %v127 = vrot.slane %v122, %v126
    %129 = vmatprep.subr.mxu0 0.0
    %130 = vmatpush1.msra.mxu0 %v106
    %131 = vmatprep.subr.mxu0 0.0
    %132 = vmatpush1.msra.mxu0 %v107
    %133 = vmatprep.subr.mxu0 0.0
    %134 = vmatpush1.msra.mxu0 %v108
    %135 = vmatprep.subr.mxu0 0.0
    %136 = vmatpush1.msra.mxu0 %v109
    %137 = vmatprep.subr.mxu0 0.0
    %138 = vmatpush1.msra.mxu0 %v110
    %139 = vmatprep.subr.mxu0 0.0
    %140 = vmatpush1.msra.mxu0 %v111
    %141 = vmatprep.subr.mxu0 0.0
    %142 = vmatpush1.msra.mxu0 %v112
    %143 = vmatprep.subr.mxu0 0.0
    %144 = vmatpush1.msra.mxu0 %v113
    %145 = vmatprep.subr.mxu0 0.0
    %146 = vmatpush1.msra.mxu0 %v114
    %147 = vmatprep.subr.mxu0 0.0
    %148 = vmatpush1.msra.mxu0 %v115
    %149 = vmatprep.subr.mxu0 0.0
    %150 = vmatpush1.msra.mxu0 %v116
    %151 = vmatprep.subr.mxu0 0.0
    %152 = vmatpush1.msra.mxu0 %v117
    %153 = vmatprep.subr.mxu0 0.0
    %154 = vmatpush1.msra.mxu0 %v118
    %155 = vmatprep.subr.mxu0 0.0
    %156 = vmatpush1.msra.mxu0 %v119
    %157 = vmatprep.subr.mxu0 0.0
    %158 = vmatpush1.msra.mxu0 %v120
    %159 = vmatprep.subr.mxu0 0.0
    %160 = vmatpush1.msra.mxu0 %v121
    %161 = vmatprep.subr.mxu0 0.0
    %162 = vmatpush1.msra.mxu0 0.0
    %163 = vmatprep.subr.mxu0 0.0
    %164 = vmatpush1.msra.mxu0 0.0
    %165 = vmatprep.subr.mxu0 0.0
    %166 = vmatpush1.msra.mxu0 0.0
    %167 = vmatprep.subr.mxu0 0.0
    %168 = vmatpush1.msra.mxu0 0.0
    %169 = vmatprep.subr.mxu0 0.0
    %170 = vmatpush1.msra.mxu0 0.0
    %171 = vmatprep.subr.mxu0 0.0
    %172 = vmatpush1.msra.mxu0 0.0
    %173 = vmatprep.subr.mxu0 0.0
    %174 = vmatpush1.msra.mxu0 0.0
    %175 = vmatprep.subr.mxu0 0.0
    %176 = vmatpush1.msra.mxu0 0.0
    %177 = vmatprep.subr.mxu0 0.0
    %178 = vmatpush1.msra.mxu0 0.0
    %179 = vmatprep.subr.mxu0 0.0
    %180 = vmatpush1.msra.mxu0 0.0
    %181 = vmatprep.subr.mxu0 0.0
    %182 = vmatpush1.msra.mxu0 0.0
    %183 = vmatprep.subr.mxu0 0.0
    %184 = vmatpush1.msra.mxu0 0.0
    %185 = vmatprep.subr.mxu0 0.0
    %186 = vmatpush1.msra.mxu0 0.0
    %187 = vmatprep.subr.mxu0 0.0
    %188 = vmatpush1.msra.mxu0 0.0
    %189 = vmatprep.subr.mxu0 0.0
    %190 = vmatpush1.msra.mxu0 0.0
    %191 = vmatprep.subr.mxu0 0.0
    %192 = vmatpush1.msra.mxu0 0.0
    %193 = vmatprep.mubr.f32.mxu0 0.0
    %194 = vmatmul.mubr.f32.gmra.mrb[0].mxu0 %v105
    %v195 = vpop.f32.mrb[0].mxu0
    %v196 = vadd.f32 %v127, %v195
    %v197 = vpop.f32.mrb[0].mxu0
    %198 = vdwg.mxu0
    %v199 = vmax.f32 %v196, 0.0
    %200 = vst [vmem:[#allocation12] sm:$0xff] %v199
    %v201 = vld [vmem:[#allocation7] sm:$0xff]
    %v202 = vld [vmem:[#allocation7 + $0x8] sm:$0xff]
    %v203 = vld [vmem:[#allocation7 + $0x10] sm:$0xff]
    %v204 = vld [vmem:[#allocation7 + $0x18] sm:$0xff]
    %v205 = vld [vmem:[#allocation7 + $0x20] sm:$0xff]
    %v206 = vld [vmem:[#allocation7 + $0x28] sm:$0xff]
    %v207 = vld [vmem:[#allocation7 + $0x30] sm:$0xff]
    %v208 = vld [vmem:[#allocation7 + $0x38] sm:$0xff]
    %v209 = vld [vmem:[#allocation7 + $0x40] sm:$0xff]
    %v210 = vld [vmem:[#allocation7 + $0x48] sm:$0xff]
    %v211 = vld [vmem:[#allocation7 + $0x50] sm:$0xff]
    %v212 = vld [vmem:[#allocation7 + $0x58] sm:$0xff]
    %v213 = vld [vmem:[#allocation7 + $0x60] sm:$0xff]
    %v214 = vld [vmem:[#allocation7 + $0x68] sm:$0xff]
    %v215 = vld [vmem:[#allocation7 + $0x70] sm:$0xff]
    %v216 = vld [vmem:[#allocation7 + $0x78] sm:$0xff]
    %v217 = vld [vmem:[%s6] sm:$0x1]
    %v219 = vlaneseq
    %v220 = vshrl.u32 %v219, 7
    %v221 = vsub.s32 0, %v220
    %v222 = vrot.slane %v217, %v221
    %224 = vmatprep.subr.mxu0 0.0
    %225 = vmatpush1.msra.mxu0 %v201
    %226 = vmatprep.subr.mxu0 0.0
    %227 = vmatpush1.msra.mxu0 %v202
    %228 = vmatprep.subr.mxu0 0.0
    %229 = vmatpush1.msra.mxu0 %v203
    %230 = vmatprep.subr.mxu0 0.0
    %231 = vmatpush1.msra.mxu0 %v204
    %232 = vmatprep.subr.mxu0 0.0
    %233 = vmatpush1.msra.mxu0 %v205
    %234 = vmatprep.subr.mxu0 0.0
    %235 = vmatpush1.msra.mxu0 %v206
    %236 = vmatprep.subr.mxu0 0.0
    %237 = vmatpush1.msra.mxu0 %v207
    %238 = vmatprep.subr.mxu0 0.0
    %239 = vmatpush1.msra.mxu0 %v208
    %240 = vmatprep.subr.mxu0 0.0
    %241 = vmatpush1.msra.mxu0 %v209
    %242 = vmatprep.subr.mxu0 0.0
    %243 = vmatpush1.msra.mxu0 %v210
    %244 = vmatprep.subr.mxu0 0.0
    %245 = vmatpush1.msra.mxu0 %v211
    %246 = vmatprep.subr.mxu0 0.0
    %247 = vmatpush1.msra.mxu0 %v212
    %248 = vmatprep.subr.mxu0 0.0
    %249 = vmatpush1.msra.mxu0 %v213
    %250 = vmatprep.subr.mxu0 0.0
    %251 = vmatpush1.msra.mxu0 %v214
    %252 = vmatprep.subr.mxu0 0.0
    %253 = vmatpush1.msra.mxu0 %v215
    %254 = vmatprep.subr.mxu0 0.0
    %255 = vmatpush1.msra.mxu0 %v216
    %256 = vmatprep.subr.mxu0 0.0
    %257 = vmatpush1.msra.mxu0 0.0
    %258 = vmatprep.subr.mxu0 0.0
    %259 = vmatpush1.msra.mxu0 0.0
    %260 = vmatprep.subr.mxu0 0.0
    %261 = vmatpush1.msra.mxu0 0.0
    %262 = vmatprep.subr.mxu0 0.0
    %263 = vmatpush1.msra.mxu0 0.0
    %264 = vmatprep.subr.mxu0 0.0
    %265 = vmatpush1.msra.mxu0 0.0
    %266 = vmatprep.subr.mxu0 0.0
    %267 = vmatpush1.msra.mxu0 0.0
    %268 = vmatprep.subr.mxu0 0.0
    %269 = vmatpush1.msra.mxu0 0.0
    %270 = vmatprep.subr.mxu0 0.0
    %271 = vmatpush1.msra.mxu0 0.0
    %272 = vmatprep.subr.mxu0 0.0
    %273 = vmatpush1.msra.mxu0 0.0
    %274 = vmatprep.subr.mxu0 0.0
    %275 = vmatpush1.msra.mxu0 0.0
    %276 = vmatprep.subr.mxu0 0.0
    %277 = vmatpush1.msra.mxu0 0.0
    %278 = vmatprep.subr.mxu0 0.0
    %279 = vmatpush1.msra.mxu0 0.0
    %280 = vmatprep.subr.mxu0 0.0
    %281 = vmatpush1.msra.mxu0 0.0
    %282 = vmatprep.subr.mxu0 0.0
    %283 = vmatpush1.msra.mxu0 0.0
    %284 = vmatprep.subr.mxu0 0.0
    %285 = vmatpush1.msra.mxu0 0.0
    %286 = vmatprep.subr.mxu0 0.0
    %287 = vmatpush1.msra.mxu0 0.0
    %288 = vmatprep.mubr.f32.mxu0 0.0
    %289 = vmatmul.mubr.f32.gmra.mrb[0].mxu0 %v199
    %v290 = vpop.f32.mrb[0].mxu0
    %v291 = vadd.f32 %v222, %v290
    %v292 = vpop.f32.mrb[0].mxu0
    %293 = vdwg.mxu0
    %v294 = vmax.f32 %v291, 0.0
    %295 = vst [vmem:[#allocation14] sm:$0xff] %v294
    %v296 = vld [vmem:[#allocation8] sm:$0xff]
    %v297 = vld [vmem:[#allocation8 + $0x8] sm:$0xff]
    %v298 = vld [vmem:[#allocation8 + $0x10] sm:$0xff]
    %v299 = vld [vmem:[#allocation8 + $0x18] sm:$0xff]
    %v300 = vld [vmem:[#allocation8 + $0x20] sm:$0xff]
    %v301 = vld [vmem:[#allocation8 + $0x28] sm:$0xff]
    %v302 = vld [vmem:[#allocation8 + $0x30] sm:$0xff]
    %v303 = vld [vmem:[#allocation8 + $0x38] sm:$0xff]
    %v304 = vld [vmem:[#allocation8 + $0x40] sm:$0xff]
    %v305 = vld [vmem:[#allocation8 + $0x48] sm:$0xff]
    %v306 = vld [vmem:[#allocation8 + $0x50] sm:$0xff]
    %v307 = vld [vmem:[#allocation8 + $0x58] sm:$0xff]
    %v308 = vld [vmem:[#allocation8 + $0x60] sm:$0xff]
    %v309 = vld [vmem:[#allocation8 + $0x68] sm:$0xff]
    %v310 = vld [vmem:[#allocation8 + $0x70] sm:$0xff]
    %v311 = vld [vmem:[#allocation8 + $0x78] sm:$0xff]
    %v312 = vld [vmem:[%s7] sm:$0x1]
    %v314 = vlaneseq
    %v315 = vshrl.u32 %v314, 7
    %v316 = vsub.s32 0, %v315
    %v317 = vrot.slane %v312, %v316
    %319 = vmatprep.subr.mxu0 0.0
    %320 = vmatpush1.msra.mxu0 %v296
    %321 = vmatprep.subr.mxu0 0.0
    %322 = vmatpush1.msra.mxu0 %v297
    %323 = vmatprep.subr.mxu0 0.0
    %324 = vmatpush1.msra.mxu0 %v298
    %325 = vmatprep.subr.mxu0 0.0
    %326 = vmatpush1.msra.mxu0 %v299
    %327 = vmatprep.subr.mxu0 0.0
    %328 = vmatpush1.msra.mxu0 %v300
    %329 = vmatprep.subr.mxu0 0.0
    %330 = vmatpush1.msra.mxu0 %v301
    %331 = vmatprep.subr.mxu0 0.0
    %332 = vmatpush1.msra.mxu0 %v302
    %333 = vmatprep.subr.mxu0 0.0
    %334 = vmatpush1.msra.mxu0 %v303
    %335 = vmatprep.subr.mxu0 0.0
    %336 = vmatpush1.msra.mxu0 %v304
    %337 = vmatprep.subr.mxu0 0.0
    %338 = vmatpush1.msra.mxu0 %v305
    %339 = vmatprep.subr.mxu0 0.0
    %340 = vmatpush1.msra.mxu0 %v306
    %341 = vmatprep.subr.mxu0 0.0
    %342 = vmatpush1.msra.mxu0 %v307
    %343 = vmatprep.subr.mxu0 0.0
    %344 = vmatpush1.msra.mxu0 %v308
    %345 = vmatprep.subr.mxu0 0.0
    %346 = vmatpush1.msra.mxu0 %v309
    %347 = vmatprep.subr.mxu0 0.0
    %348 = vmatpush1.msra.mxu0 %v310
    %349 = vmatprep.subr.mxu0 0.0
    %350 = vmatpush1.msra.mxu0 %v311
    %351 = vmatprep.subr.mxu0 0.0
    %352 = vmatpush1.msra.mxu0 0.0
    %353 = vmatprep.subr.mxu0 0.0
    %354 = vmatpush1.msra.mxu0 0.0
    %355 = vmatprep.subr.mxu0 0.0
    %356 = vmatpush1.msra.mxu0 0.0
    %357 = vmatprep.subr.mxu0 0.0
    %358 = vmatpush1.msra.mxu0 0.0
    %359 = vmatprep.subr.mxu0 0.0
    %360 = vmatpush1.msra.mxu0 0.0
    %361 = vmatprep.subr.mxu0 0.0
    %362 = vmatpush1.msra.mxu0 0.0
    %363 = vmatprep.subr.mxu0 0.0
    %364 = vmatpush1.msra.mxu0 0.0
    %365 = vmatprep.subr.mxu0 0.0
    %366 = vmatpush1.msra.mxu0 0.0
    %367 = vmatprep.subr.mxu0 0.0
    %368 = vmatpush1.msra.mxu0 0.0
    %369 = vmatprep.subr.mxu0 0.0
    %370 = vmatpush1.msra.mxu0 0.0
    %371 = vmatprep.subr.mxu0 0.0
    %372 = vmatpush1.msra.mxu0 0.0
    %373 = vmatprep.subr.mxu0 0.0
    %374 = vmatpush1.msra.mxu0 0.0
    %375 = vmatprep.subr.mxu0 0.0
    %376 = vmatpush1.msra.mxu0 0.0
    %377 = vmatprep.subr.mxu0 0.0
    %378 = vmatpush1.msra.mxu0 0.0
    %379 = vmatprep.subr.mxu0 0.0
    %380 = vmatpush1.msra.mxu0 0.0
    %381 = vmatprep.subr.mxu0 0.0
    %382 = vmatpush1.msra.mxu0 0.0
    %383 = vmatprep.mubr.f32.mxu0 0.0
    %384 = vmatmul.mubr.f32.gmra.mrb[0].mxu0 %v294
    %v385 = vpop.f32.mrb[0].mxu0
    %v386 = vadd.f32 %v317, %v385
    %v387 = vpop.f32.mrb[0].mxu0
    %388 = vdwg.mxu0
    %v389 = vmax.f32 %v386, 0.0
    %390 = vst [vmem:[#allocation15] sm:$0xff] %v389
    %v391 = vld [vmem:[#allocation10] sm:$0xff]
    %v392 = vld [vmem:[#allocation10 + $0x8] sm:$0xff]
    %v393 = vld [vmem:[#allocation10 + $0x10] sm:$0xff]
    %v394 = vld [vmem:[#allocation10 + $0x18] sm:$0xff]
    %v395 = vld [vmem:[#allocation10 + $0x20] sm:$0xff]
    %v396 = vld [vmem:[#allocation10 + $0x28] sm:$0xff]
    %v397 = vld [vmem:[#allocation10 + $0x30] sm:$0xff]
    %v398 = vld [vmem:[#allocation10 + $0x38] sm:$0xff]
    %v399 = vld [vmem:[#allocation10 + $0x40] sm:$0xff]
    %v400 = vld [vmem:[#allocation10 + $0x48] sm:$0xff]
    %v401 = vld [vmem:[#allocation10 + $0x50] sm:$0xff]
    %v402 = vld [vmem:[#allocation10 + $0x58] sm:$0xff]
    %v403 = vld [vmem:[#allocation10 + $0x60] sm:$0xff]
    %v404 = vld [vmem:[#allocation10 + $0x68] sm:$0xff]
    %v405 = vld [vmem:[#allocation10 + $0x70] sm:$0xff]
    %v406 = vld [vmem:[#allocation10 + $0x78] sm:$0xff]
    %v407 = vld [vmem:[%s8] sm:$0x1]
    %v409 = vlaneseq
    %v410 = vshrl.u32 %v409, 7
    %v411 = vsub.s32 0, %v410
    %v412 = vrot.slane %v407, %v411
    %414 = vmatprep.subr.mxu0 0.0
    %415 = vmatpush1.msra.mxu0 %v391
    %416 = vmatprep.subr.mxu0 0.0
    %417 = vmatpush1.msra.mxu0 %v392
    %418 = vmatprep.subr.mxu0 0.0
    %419 = vmatpush1.msra.mxu0 %v393
    %420 = vmatprep.subr.mxu0 0.0
    %421 = vmatpush1.msra.mxu0 %v394
    %422 = vmatprep.subr.mxu0 0.0
    %423 = vmatpush1.msra.mxu0 %v395
    %424 = vmatprep.subr.mxu0 0.0
    %425 = vmatpush1.msra.mxu0 %v396
    %426 = vmatprep.subr.mxu0 0.0
    %427 = vmatpush1.msra.mxu0 %v397
    %428 = vmatprep.subr.mxu0 0.0
    %429 = vmatpush1.msra.mxu0 %v398
    %430 = vmatprep.subr.mxu0 0.0
    %431 = vmatpush1.msra.mxu0 %v399
    %432 = vmatprep.subr.mxu0 0.0
    %433 = vmatpush1.msra.mxu0 %v400
    %434 = vmatprep.subr.mxu0 0.0
    %435 = vmatpush1.msra.mxu0 %v401
    %436 = vmatprep.subr.mxu0 0.0
    %437 = vmatpush1.msra.mxu0 %v402
    %438 = vmatprep.subr.mxu0 0.0
    %439 = vmatpush1.msra.mxu0 %v403
    %440 = vmatprep.subr.mxu0 0.0
    %441 = vmatpush1.msra.mxu0 %v404
    %442 = vmatprep.subr.mxu0 0.0
    %443 = vmatpush1.msra.mxu0 %v405
    %444 = vmatprep.subr.mxu0 0.0
    %445 = vmatpush1.msra.mxu0 %v406
    %446 = vmatprep.subr.mxu0 0.0
    %447 = vmatpush1.msra.mxu0 0.0
    %448 = vmatprep.subr.mxu0 0.0
    %449 = vmatpush1.msra.mxu0 0.0
    %450 = vmatprep.subr.mxu0 0.0
    %451 = vmatpush1.msra.mxu0 0.0
    %452 = vmatprep.subr.mxu0 0.0
    %453 = vmatpush1.msra.mxu0 0.0
    %454 = vmatprep.subr.mxu0 0.0
    %455 = vmatpush1.msra.mxu0 0.0
    %456 = vmatprep.subr.mxu0 0.0
    %457 = vmatpush1.msra.mxu0 0.0
    %458 = vmatprep.subr.mxu0 0.0
    %459 = vmatpush1.msra.mxu0 0.0
    %460 = vmatprep.subr.mxu0 0.0
    %461 = vmatpush1.msra.mxu0 0.0
    %462 = vmatprep.subr.mxu0 0.0
    %463 = vmatpush1.msra.mxu0 0.0
    %464 = vmatprep.subr.mxu0 0.0
    %465 = vmatpush1.msra.mxu0 0.0
    %466 = vmatprep.subr.mxu0 0.0
    %467 = vmatpush1.msra.mxu0 0.0
    %468 = vmatprep.subr.mxu0 0.0
    %469 = vmatpush1.msra.mxu0 0.0
    %470 = vmatprep.subr.mxu0 0.0
    %471 = vmatpush1.msra.mxu0 0.0
    %472 = vmatprep.subr.mxu0 0.0
    %473 = vmatpush1.msra.mxu0 0.0
    %474 = vmatprep.subr.mxu0 0.0
    %475 = vmatpush1.msra.mxu0 0.0
    %476 = vmatprep.subr.mxu0 0.0
    %477 = vmatpush1.msra.mxu0 0.0
    %478 = vmatprep.mubr.f32.mxu0 0.0
    %479 = vmatmul.mubr.f32.gmra.mrb[0].mxu0 %v389
    %v480 = vpop.f32.mrb[0].mxu0
    %v481 = vadd.f32 %v412, %v480
    %v482 = vpop.f32.mrb[0].mxu0
    %483 = vdwg.mxu0
    %484 = vst [vmem:[#allocation11] sm:$0xff] %v481
    // Predicated region
    $region58: #{tpu_custom_call.1} parent=1 // pred_check
      _
    $region59: #{tpu_custom_call.1} parent=1 // pred_check_branch
      %486 = sbr.rel (0) target = $region61
    $region60: #{tpu_custom_call.1} parent=1 // pred_region
      %s488 = ssub.s32 128, 128
      %489 = vsyncadd [#allocation4], %s488
      %s491 = sshll.u32 [#allocation11], 4
      %s492 = int_to_ptr.vmem [resolvable:$true] %s491
      %494 = dma.vmem_to_hbm [thread:$0]  %s492, 128, %s9, [#allocation4]
    $region61: #{tpu_custom_call.1} parent=1 // pred_fallthru
      _
    // Predicated region
    $region62: #{tpu_custom_call.1} parent=1 // pred_check
      _
    $region63: #{tpu_custom_call.1} parent=1 // pred_check_branch
      %496 = sbr.rel (0) target = $region65
    $region64: #{tpu_custom_call.1} parent=1 // pred_region
      %s498 = ssub.s32 128, 128
      %499 = vsyncadd [#allocation13], %s498
      %s501 = sshll.u32 [#allocation12], 4
      %s502 = int_to_ptr.vmem [resolvable:$true] %s501
      %504 = dma.vmem_to_hbm [thread:$0]  %s502, 128, %s10, [#allocation13]
    $region65: #{tpu_custom_call.1} parent=1 // pred_fallthru
      _
    // Predicated region
    $region66: #{tpu_custom_call.1} parent=1 // pred_check
      _
    $region67: #{tpu_custom_call.1} parent=1 // pred_check_branch
      %506 = sbr.rel (0) target = $region69
    $region68: #{tpu_custom_call.1} parent=1 // pred_region
      %s508 = ssub.s32 128, 128
      %509 = vsyncadd [#allocation13], %s508
      %s511 = sshll.u32 [#allocation14], 4
      %s512 = int_to_ptr.vmem [resolvable:$true] %s511
      %514 = dma.vmem_to_hbm [thread:$0]  %s512, 128, %s11, [#allocation13]
    $region69: #{tpu_custom_call.1} parent=1 // pred_fallthru
      _
    // Predicated region
    $region70: #{tpu_custom_call.1} parent=1 // pred_check
      _
    $region71: #{tpu_custom_call.1} parent=1 // pred_check_branch
      %516 = sbr.rel (0) target = $region73
    $region72: #{tpu_custom_call.1} parent=1 // pred_region
      %s518 = ssub.s32 128, 128
      %519 = vsyncadd [#allocation16], %s518
      %s521 = sshll.u32 [#allocation15], 4
      %s522 = int_to_ptr.vmem [resolvable:$true] %s521
      %524 = dma.vmem_to_hbm [thread:$0]  %s522, 128, %s12, [#allocation16]
    $region73: #{tpu_custom_call.1} parent=1 // pred_fallthru
      _
    // Predicated region
    $region74: #{tpu_custom_call.1} parent=1 // pred_check
      _
    $region75: #{tpu_custom_call.1} parent=1 // pred_check_branch
      %526 = sbr.rel (0) target = $region77
    $region76: #{tpu_custom_call.1} parent=1 // pred_region
      %527 = dma.done [#allocation4], 128
    $region77: #{tpu_custom_call.1} parent=1 // pred_fallthru
      _
    // Predicated region
    $region78: #{tpu_custom_call.1} parent=1 // pred_check
      _
    $region79: #{tpu_custom_call.1} parent=1 // pred_check_branch
      %529 = sbr.rel (0) target = $region81
    $region80: #{tpu_custom_call.1} parent=1 // pred_region
      %530 = dma.done [#allocation13], 128
    $region81: #{tpu_custom_call.1} parent=1 // pred_fallthru
      _
    // Predicated region
    $region82: #{tpu_custom_call.1} parent=1 // pred_check
      _
    $region83: #{tpu_custom_call.1} parent=1 // pred_check_branch
      %532 = sbr.rel (0) target = $region85
    $region84: #{tpu_custom_call.1} parent=1 // pred_region
      %533 = dma.done [#allocation13], 128
    $region85: #{tpu_custom_call.1} parent=1 // pred_fallthru
      _
    // Predicated region
    $region86: #{tpu_custom_call.1} parent=1 // pred_check
      _
    $region87: #{tpu_custom_call.1} parent=1 // pred_check_branch
      %535 = sbr.rel (0) target = $region89
    $region88: #{tpu_custom_call.1} parent=1 // pred_region
      %536 = dma.done [#allocation16], 128
    $region89: #{tpu_custom_call.1} parent=1 // pred_fallthru
      _
    %537 = vsyncpa [#allocation3], 1
    %538 = vsyncpa [#allocation6], 1
    %539 = vsyncpa [#allocation9], 1
    %540 = vsyncpa [#allocation4], 1
    %541 = vsyncpa [#allocation13], 1
    %542 = vsyncpa [#allocation16], 1

// kernel: tpu_custom_call.1
$region0: #{tpu_custom_call.1}
  #allocation0 [shape = 'u32[]', space=smem, size = 0x4, offset = 0x4, fixed_abs, tag = 'smem constant byte address 0x4 - core index']
  #allocation1 [shape = 'u32[144,128]{1,0:T(1,128)}', space=vmem, size = 0x12000, scoped, tag = 'internal scratch']
  %s0 = inlined_call_operand.hbm [shape: f32[8,128], index: 0, kind: input, shape index: {}]
  %s1 = inlined_call_operand.hbm [shape: f32[128,128], index: 1, kind: input, shape index: {}]
  %s2 = inlined_call_operand.hbm [shape: f32[128,128], index: 2, kind: input, shape index: {}]
  %s3 = inlined_call_operand.hbm [shape: f32[128,128], index: 3, kind: input, shape index: {}]
  %s4 = inlined_call_operand.hbm [shape: f32[128,128], index: 4, kind: input, shape index: {}]
  %s5 = inlined_call_operand.vmem [shape: f32[1,128], index: 5, kind: input, shape index: {}]
  %s6 = inlined_call_operand.vmem [shape: f32[1,128], index: 6, kind: input, shape index: {}]
  %s7 = inlined_call_operand.vmem [shape: f32[1,128], index: 7, kind: input, shape index: {}]
  %s8 = inlined_call_operand.vmem [shape: f32[1,128], index: 8, kind: input, shape index: {}]
  %s9 = inlined_call_operand.hbm [shape: f32[8,128], index: 9, kind: output, shape index: {0}]
  %s10 = inlined_call_operand.hbm [shape: f32[8,128], index: 10, kind: output, shape index: {1}]
  %s11 = inlined_call_operand.hbm [shape: f32[8,128], index: 11, kind: output, shape index: {2}]
  %s12 = inlined_call_operand.hbm [shape: f32[8,128], index: 12, kind: output, shape index: {3}]
  %13 = xla_tuple %s9, %s10, %s11, %s12
  %s14 = sld [smem:[#allocation0]]
  $region90: #{tpu_custom_call.1} parent=0
    _
  %s16 = ssub.s32 1, %s14
  %s17 = scalar_select 0, %s16, %s14
  $region1: #{tpu_custom_call.1} parent=0
    #allocation2 [shape = 'u8[4096]{0}', space=vmem, size = 0x1000, scoped, tag = 'input window, operand 0, single buffered']
    #allocation3 [shape = 's32[1]{0}', space=sflag, size = 0x4, scoped, tag = 'scoped memory for tpu_custom_call.1']
    #allocation4 [shape = 's32[1]{0}', space=sflag, size = 0x4, scoped, tag = 'scoped memory for tpu_custom_call.1']
    #allocation5 [shape = 'u8[65536]{0}', space=vmem, size = 0x10000, scoped, tag = 'input window, operand 1, single buffered']
    #allocation6 [shape = 's32[1]{0}', space=sflag, size = 0x4, scoped, tag = 'scoped memory for tpu_custom_call.1']
    #allocation7 [shape = 'u8[65536]{0}', space=vmem, size = 0x10000, scoped, tag = 'input window, operand 2, single buffered']
    #allocation8 [shape = 'u8[65536]{0}', space=vmem, size = 0x10000, scoped, tag = 'input window, operand 3, single buffered']
    #allocation9 [shape = 's32[1]{0}', space=sflag, size = 0x4, scoped, tag = 'scoped memory for tpu_custom_call.1']
    #allocation10 [shape = 'u8[65536]{0}', space=vmem, size = 0x10000, scoped, tag = 'input window, operand 4, single buffered']
    #allocation11 [shape = 'u8[4096]{0}', space=vmem, size = 0x1000, scoped, tag = 'output window, operand 0, single buffered']
    #allocation12 [shape = 'u8[4096]{0}', space=vmem, size = 0x1000, scoped, tag = 'output window, operand 1, single buffered']
    #allocation13 [shape = 's32[1]{0}', space=sflag, size = 0x4, scoped, tag = 'scoped memory for tpu_custom_call.1']
    #allocation14 [shape = 'u8[4096]{0}', space=vmem, size = 0x1000, scoped, tag = 'output window, operand 2, single buffered']
    #allocation15 [shape = 'u8[4096]{0}', space=vmem, size = 0x1000, scoped, tag = 'output window, operand 3, single buffered']
    #allocation16 [shape = 's32[1]{0}', space=sflag, size = 0x4, scoped, tag = 'scoped memory for tpu_custom_call.1']
    %18 = vsyncpa [#allocation3], 0
    %19 = vsyncpa [#allocation6], 0
    %20 = vsyncpa [#allocation9], 0
    %21 = vsyncpa [#allocation4], 0
    %22 = vsyncpa [#allocation13], 0
    %23 = vsyncpa [#allocation16], 0
    // Predicated region
    $region2: #{tpu_custom_call.1} parent=1 // pred_check
      _
    $region3: #{tpu_custom_call.1} parent=1 // pred_check_branch
      %25 = sbr.rel (0) target = $region5
    $region4: #{tpu_custom_call.1} parent=1 // pred_region
      %s27 = ssub.s32 128, 128
      %28 = vsyncadd [#allocation3], %s27
      %s30 = sshll.u32 [#allocation2], 4
      %s31 = int_to_ptr.vmem [resolvable:$true] %s30
      %33 = dma.hbm_to_vmem [thread:$0]  %s0, 128, %s31, [#allocation3]
    $region5: #{tpu_custom_call.1} parent=1 // pred_fallthru
      _
    // Predicated region
    $region6: #{tpu_custom_call.1} parent=1 // pred_check
      _
    $region7: #{tpu_custom_call.1} parent=1 // pred_check_branch
      %35 = sbr.rel (0) target = $region9
    $region8: #{tpu_custom_call.1} parent=1 // pred_region
      %s37 = ssub.s32 2048, 2048
      %38 = vsyncadd [#allocation6], %s37
      %s39 = sshll.u32 [#allocation5], 4
      %s40 = int_to_ptr.vmem [resolvable:$true] %s39
      %45 = dma.hbm_to_vmem [thread:$0]  %s1, 2048, %s40, [#allocation6], 128, 128, 8
    $region9: #{tpu_custom_call.1} parent=1 // pred_fallthru
      _
    // Predicated region
    $region10: #{tpu_custom_call.1} parent=1 // pred_check
      _
    $region11: #{tpu_custom_call.1} parent=1 // pred_check_branch
      %47 = sbr.rel (0) target = $region13
    $region12: #{tpu_custom_call.1} parent=1 // pred_region
      %s49 = ssub.s32 2048, 2048
      %50 = vsyncadd [#allocation6], %s49
      %s51 = sshll.u32 [#allocation7], 4
      %s52 = int_to_ptr.vmem [resolvable:$true] %s51
      %57 = dma.hbm_to_vmem [thread:$0]  %s2, 2048, %s52, [#allocation6], 128, 128, 8
    $region13: #{tpu_custom_call.1} parent=1 // pred_fallthru
      _
    // Predicated region
    $region14: #{tpu_custom_call.1} parent=1 // pred_check
      _
    $region15: #{tpu_custom_call.1} parent=1 // pred_check_branch
      %59 = sbr.rel (0) target = $region17
    $region16: #{tpu_custom_call.1} parent=1 // pred_region
      %s61 = ssub.s32 2048, 2048
      %62 = vsyncadd [#allocation9], %s61
      %s63 = sshll.u32 [#allocation8], 4
      %s64 = int_to_ptr.vmem [resolvable:$true] %s63
      %69 = dma.hbm_to_vmem [thread:$0]  %s3, 2048, %s64, [#allocation9], 128, 128, 8
    $region17: #{tpu_custom_call.1} parent=1 // pred_fallthru
      _
    // Predicated region
    $region18: #{tpu_custom_call.1} parent=1 // pred_check
      _
    $region19: #{tpu_custom_call.1} parent=1 // pred_check_branch
      %71 = sbr.rel (0) target = $region21
    $region20: #{tpu_custom_call.1} parent=1 // pred_region
      %s73 = ssub.s32 2048, 2048
      %74 = vsyncadd [#allocation9], %s73
      %s75 = sshll.u32 [#allocation10], 4
      %s76 = int_to_ptr.vmem [resolvable:$true] %s75
      %81 = dma.hbm_to_vmem [thread:$0]  %s4, 2048, %s76, [#allocation9], 128, 128, 8
    $region21: #{tpu_custom_call.1} parent=1 // pred_fallthru
      _
    // Predicated region
    $region22: #{tpu_custom_call.1} parent=1 // pred_check
      _
    $region23: #{tpu_custom_call.1} parent=1 // pred_check_branch
      %83 = sbr.rel (0) target = $region25
    $region24: #{tpu_custom_call.1} parent=1 // pred_region
      _
    $region25: #{tpu_custom_call.1} parent=1 // pred_fallthru
      _
    // Predicated region
    $region26: #{tpu_custom_call.1} parent=1 // pred_check
      _
    $region27: #{tpu_custom_call.1} parent=1 // pred_check_branch
      %85 = sbr.rel (0) target = $region29
    $region28: #{tpu_custom_call.1} parent=1 // pred_region
      _
    $region29: #{tpu_custom_call.1} parent=1 // pred_fallthru
      _
    // Predicated region
    $region30: #{tpu_custom_call.1} parent=1 // pred_check
      _
    $region31: #{tpu_custom_call.1} parent=1 // pred_check_branch
      %87 = sbr.rel (0) target = $region33
    $region32: #{tpu_custom_call.1} parent=1 // pred_region
      _
    $region33: #{tpu_custom_call.1} parent=1 // pred_fallthru
      _
    // Predicated region
    $region34: #{tpu_custom_call.1} parent=1 // pred_check
      _
    $region35: #{tpu_custom_call.1} parent=1 // pred_check_branch
      %89 = sbr.rel (0) target = $region37
    $region36: #{tpu_custom_call.1} parent=1 // pred_region
      _
    $region37: #{tpu_custom_call.1} parent=1 // pred_fallthru
      _
    // Predicated region
    $region38: #{tpu_custom_call.1} parent=1 // pred_check
      _
    $region39: #{tpu_custom_call.1} parent=1 // pred_check_branch
      %91 = sbr.rel (0) target = $region41
    $region40: #{tpu_custom_call.1} parent=1 // pred_region
      %92 = dma.done [#allocation3], 128
    $region41: #{tpu_custom_call.1} parent=1 // pred_fallthru
      _
    // Predicated region
    $region42: #{tpu_custom_call.1} parent=1 // pred_check
      _
    $region43: #{tpu_custom_call.1} parent=1 // pred_check_branch
      %94 = sbr.rel (0) target = $region45
    $region44: #{tpu_custom_call.1} parent=1 // pred_region
      %95 = dma.done [#allocation6], 2048
    $region45: #{tpu_custom_call.1} parent=1 // pred_fallthru
      _
    // Predicated region
    $region46: #{tpu_custom_call.1} parent=1 // pred_check
      _
    $region47: #{tpu_custom_call.1} parent=1 // pred_check_branch
      %97 = sbr.rel (0) target = $region49
    $region48: #{tpu_custom_call.1} parent=1 // pred_region
      %98 = dma.done [#allocation6], 2048
    $region49: #{tpu_custom_call.1} parent=1 // pred_fallthru
      _
    // Predicated region
    $region50: #{tpu_custom_call.1} parent=1 // pred_check
      _
    $region51: #{tpu_custom_call.1} parent=1 // pred_check_branch
      %100 = sbr.rel (0) target = $region53
    $region52: #{tpu_custom_call.1} parent=1 // pred_region
      %101 = dma.done [#allocation9], 2048
    $region53: #{tpu_custom_call.1} parent=1 // pred_fallthru
      _
    // Predicated region
    $region54: #{tpu_custom_call.1} parent=1 // pred_check
      _
    $region55: #{tpu_custom_call.1} parent=1 // pred_check_branch
      %103 = sbr.rel (0) target = $region57
    $region56: #{tpu_custom_call.1} parent=1 // pred_region
      %104 = dma.done [#allocation9], 2048
    $region57: #{tpu_custom_call.1} parent=1 // pred_fallthru
      _
    %v105 = vld [vmem:[#allocation2] sm:$0xff]
    %v106 = vld [vmem:[#allocation5] sm:$0xff]
    %v107 = vld [vmem:[#allocation5 + $0x8] sm:$0xff]
    %v108 = vld [vmem:[#allocation5 + $0x10] sm:$0xff]
    %v109 = vld [vmem:[#allocation5 + $0x18] sm:$0xff]
    %v110 = vld [vmem:[#allocation5 + $0x20] sm:$0xff]
    %v111 = vld [vmem:[#allocation5 + $0x28] sm:$0xff]
    %v112 = vld [vmem:[#allocation5 + $0x30] sm:$0xff]
    %v113 = vld [vmem:[#allocation5 + $0x38] sm:$0xff]
    %v114 = vld [vmem:[#allocation5 + $0x40] sm:$0xff]
    %v115 = vld [vmem:[#allocation5 + $0x48] sm:$0xff]
    %v116 = vld [vmem:[#allocation5 + $0x50] sm:$0xff]
    %v117 = vld [vmem:[#allocation5 + $0x58] sm:$0xff]
    %v118 = vld [vmem:[#allocation5 + $0x60] sm:$0xff]
    %v119 = vld [vmem:[#allocation5 + $0x68] sm:$0xff]
    %v120 = vld [vmem:[#allocation5 + $0x70] sm:$0xff]
    %v121 = vld [vmem:[#allocation5 + $0x78] sm:$0xff]
    %v122 = vld [vmem:[%s5] sm:$0x1]
    %v124 = vlaneseq
    %v125 = vshrl.u32 %v124, 7
    %v126 = vsub.s32 0, %v125
    %v127 = vrot.slane %v122, %v126
    %129 = vmatprep.subr.mxu0 0.0
    %130 = vmatpush1.msra.mxu0 %v106
    %131 = vmatprep.subr.mxu0 0.0
    %132 = vmatpush1.msra.mxu0 %v107
    %133 = vmatprep.subr.mxu0 0.0
    %134 = vmatpush1.msra.mxu0 %v108
    %135 = vmatprep.subr.mxu0 0.0
    %136 = vmatpush1.msra.mxu0 %v109
    %137 = vmatprep.subr.mxu0 0.0
    %138 = vmatpush1.msra.mxu0 %v110
    %139 = vmatprep.subr.mxu0 0.0
    %140 = vmatpush1.msra.mxu0 %v111
    %141 = vmatprep.subr.mxu0 0.0
    %142 = vmatpush1.msra.mxu0 %v112
    %143 = vmatprep.subr.mxu0 0.0
    %144 = vmatpush1.msra.mxu0 %v113
    %145 = vmatprep.subr.mxu0 0.0
    %146 = vmatpush1.msra.mxu0 %v114
    %147 = vmatprep.subr.mxu0 0.0
    %148 = vmatpush1.msra.mxu0 %v115
    %149 = vmatprep.subr.mxu0 0.0
    %150 = vmatpush1.msra.mxu0 %v116
    %151 = vmatprep.subr.mxu0 0.0
    %152 = vmatpush1.msra.mxu0 %v117
    %153 = vmatprep.subr.mxu0 0.0
    %154 = vmatpush1.msra.mxu0 %v118
    %155 = vmatprep.subr.mxu0 0.0
    %156 = vmatpush1.msra.mxu0 %v119
    %157 = vmatprep.subr.mxu0 0.0
    %158 = vmatpush1.msra.mxu0 %v120
    %159 = vmatprep.subr.mxu0 0.0
    %160 = vmatpush1.msra.mxu0 %v121
    %161 = vmatprep.subr.mxu0 0.0
    %162 = vmatpush1.msra.mxu0 0.0
    %163 = vmatprep.subr.mxu0 0.0
    %164 = vmatpush1.msra.mxu0 0.0
    %165 = vmatprep.subr.mxu0 0.0
    %166 = vmatpush1.msra.mxu0 0.0
    %167 = vmatprep.subr.mxu0 0.0
    %168 = vmatpush1.msra.mxu0 0.0
    %169 = vmatprep.subr.mxu0 0.0
    %170 = vmatpush1.msra.mxu0 0.0
    %171 = vmatprep.subr.mxu0 0.0
    %172 = vmatpush1.msra.mxu0 0.0
    %173 = vmatprep.subr.mxu0 0.0
    %174 = vmatpush1.msra.mxu0 0.0
    %175 = vmatprep.subr.mxu0 0.0
    %176 = vmatpush1.msra.mxu0 0.0
    %177 = vmatprep.subr.mxu0 0.0
    %178 = vmatpush1.msra.mxu0 0.0
    %179 = vmatprep.subr.mxu0 0.0
    %180 = vmatpush1.msra.mxu0 0.0
    %181 = vmatprep.subr.mxu0 0.0
    %182 = vmatpush1.msra.mxu0 0.0
    %183 = vmatprep.subr.mxu0 0.0
    %184 = vmatpush1.msra.mxu0 0.0
    %185 = vmatprep.subr.mxu0 0.0
    %186 = vmatpush1.msra.mxu0 0.0
    %187 = vmatprep.subr.mxu0 0.0
    %188 = vmatpush1.msra.mxu0 0.0
    %189 = vmatprep.subr.mxu0 0.0
    %190 = vmatpush1.msra.mxu0 0.0
    %191 = vmatprep.subr.mxu0 0.0
    %192 = vmatpush1.msra.mxu0 0.0
    %193 = vmatprep.mubr.f32.mxu0 0.0
    %194 = vmatmul.mubr.f32.gmra.mrb[0].mxu0 %v105
    %v195 = vpop.f32.mrb[0].mxu0
    %v196 = vadd.f32 %v127, %v195
    %v197 = vpop.f32.mrb[0].mxu0
    %198 = vdwg.mxu0
    %v199 = vmax.f32 %v196, 0.0
    %200 = vst [vmem:[#allocation12] sm:$0xff] %v199
    %v201 = vld [vmem:[#allocation7] sm:$0xff]
    %v202 = vld [vmem:[#allocation7 + $0x8] sm:$0xff]
    %v203 = vld [vmem:[#allocation7 + $0x10] sm:$0xff]
    %v204 = vld [vmem:[#allocation7 + $0x18] sm:$0xff]
    %v205 = vld [vmem:[#allocation7 + $0x20] sm:$0xff]
    %v206 = vld [vmem:[#allocation7 + $0x28] sm:$0xff]
    %v207 = vld [vmem:[#allocation7 + $0x30] sm:$0xff]
    %v208 = vld [vmem:[#allocation7 + $0x38] sm:$0xff]
    %v209 = vld [vmem:[#allocation7 + $0x40] sm:$0xff]
    %v210 = vld [vmem:[#allocation7 + $0x48] sm:$0xff]
    %v211 = vld [vmem:[#allocation7 + $0x50] sm:$0xff]
    %v212 = vld [vmem:[#allocation7 + $0x58] sm:$0xff]
    %v213 = vld [vmem:[#allocation7 + $0x60] sm:$0xff]
    %v214 = vld [vmem:[#allocation7 + $0x68] sm:$0xff]
    %v215 = vld [vmem:[#allocation7 + $0x70] sm:$0xff]
    %v216 = vld [vmem:[#allocation7 + $0x78] sm:$0xff]
    %v217 = vld [vmem:[%s6] sm:$0x1]
    %v219 = vlaneseq
    %v220 = vshrl.u32 %v219, 7
    %v221 = vsub.s32 0, %v220
    %v222 = vrot.slane %v217, %v221
    %224 = vmatprep.subr.mxu0 0.0
    %225 = vmatpush1.msra.mxu0 %v201
    %226 = vmatprep.subr.mxu0 0.0
    %227 = vmatpush1.msra.mxu0 %v202
    %228 = vmatprep.subr.mxu0 0.0
    %229 = vmatpush1.msra.mxu0 %v203
    %230 = vmatprep.subr.mxu0 0.0
    %231 = vmatpush1.msra.mxu0 %v204
    %232 = vmatprep.subr.mxu0 0.0
    %233 = vmatpush1.msra.mxu0 %v205
    %234 = vmatprep.subr.mxu0 0.0
    %235 = vmatpush1.msra.mxu0 %v206
    %236 = vmatprep.subr.mxu0 0.0
    %237 = vmatpush1.msra.mxu0 %v207
    %238 = vmatprep.subr.mxu0 0.0
    %239 = vmatpush1.msra.mxu0 %v208
    %240 = vmatprep.subr.mxu0 0.0
    %241 = vmatpush1.msra.mxu0 %v209
    %242 = vmatprep.subr.mxu0 0.0
    %243 = vmatpush1.msra.mxu0 %v210
    %244 = vmatprep.subr.mxu0 0.0
    %245 = vmatpush1.msra.mxu0 %v211
    %246 = vmatprep.subr.mxu0 0.0
    %247 = vmatpush1.msra.mxu0 %v212
    %248 = vmatprep.subr.mxu0 0.0
    %249 = vmatpush1.msra.mxu0 %v213
    %250 = vmatprep.subr.mxu0 0.0
    %251 = vmatpush1.msra.mxu0 %v214
    %252 = vmatprep.subr.mxu0 0.0
    %253 = vmatpush1.msra.mxu0 %v215
    %254 = vmatprep.subr.mxu0 0.0
    %255 = vmatpush1.msra.mxu0 %v216
    %256 = vmatprep.subr.mxu0 0.0
    %257 = vmatpush1.msra.mxu0 0.0
    %258 = vmatprep.subr.mxu0 0.0
    %259 = vmatpush1.msra.mxu0 0.0
    %260 = vmatprep.subr.mxu0 0.0
    %261 = vmatpush1.msra.mxu0 0.0
    %262 = vmatprep.subr.mxu0 0.0
    %263 = vmatpush1.msra.mxu0 0.0
    %264 = vmatprep.subr.mxu0 0.0
    %265 = vmatpush1.msra.mxu0 0.0
    %266 = vmatprep.subr.mxu0 0.0
    %267 = vmatpush1.msra.mxu0 0.0
    %268 = vmatprep.subr.mxu0 0.0
    %269 = vmatpush1.msra.mxu0 0.0
    %270 = vmatprep.subr.mxu0 0.0
    %271 = vmatpush1.msra.mxu0 0.0
    %272 = vmatprep.subr.mxu0 0.0
    %273 = vmatpush1.msra.mxu0 0.0
    %274 = vmatprep.subr.mxu0 0.0
    %275 = vmatpush1.msra.mxu0 0.0
    %276 = vmatprep.subr.mxu0 0.0
    %277 = vmatpush1.msra.mxu0 0.0
    %278 = vmatprep.subr.mxu0 0.0
    %279 = vmatpush1.msra.mxu0 0.0
    %280 = vmatprep.subr.mxu0 0.0
    %281 = vmatpush1.msra.mxu0 0.0
    %282 = vmatprep.subr.mxu0 0.0
    %283 = vmatpush1.msra.mxu0 0.0
    %284 = vmatprep.subr.mxu0 0.0
    %285 = vmatpush1.msra.mxu0 0.0
    %286 = vmatprep.subr.mxu0 0.0
    %287 = vmatpush1.msra.mxu0 0.0
    %288 = vmatprep.mubr.f32.mxu0 0.0
    %289 = vmatmul.mubr.f32.gmra.mrb[0].mxu0 %v199
    %v290 = vpop.f32.mrb[0].mxu0
    %v291 = vadd.f32 %v222, %v290
    %v292 = vpop.f32.mrb[0].mxu0
    %293 = vdwg.mxu0
    %v294 = vmax.f32 %v291, 0.0
    %295 = vst [vmem:[#allocation14] sm:$0xff] %v294
    %v296 = vld [vmem:[#allocation8] sm:$0xff]
    %v297 = vld [vmem:[#allocation8 + $0x8] sm:$0xff]
    %v298 = vld [vmem:[#allocation8 + $0x10] sm:$0xff]
    %v299 = vld [vmem:[#allocation8 + $0x18] sm:$0xff]
    %v300 = vld [vmem:[#allocation8 + $0x20] sm:$0xff]
    %v301 = vld [vmem:[#allocation8 + $0x28] sm:$0xff]
    %v302 = vld [vmem:[#allocation8 + $0x30] sm:$0xff]
    %v303 = vld [vmem:[#allocation8 + $0x38] sm:$0xff]
    %v304 = vld [vmem:[#allocation8 + $0x40] sm:$0xff]
    %v305 = vld [vmem:[#allocation8 + $0x48] sm:$0xff]
    %v306 = vld [vmem:[#allocation8 + $0x50] sm:$0xff]
    %v307 = vld [vmem:[#allocation8 + $0x58] sm:$0xff]
    %v308 = vld [vmem:[#allocation8 + $0x60] sm:$0xff]
    %v309 = vld [vmem:[#allocation8 + $0x68] sm:$0xff]
    %v310 = vld [vmem:[#allocation8 + $0x70] sm:$0xff]
    %v311 = vld [vmem:[#allocation8 + $0x78] sm:$0xff]
    %v312 = vld [vmem:[%s7] sm:$0x1]
    %v314 = vlaneseq
    %v315 = vshrl.u32 %v314, 7
    %v316 = vsub.s32 0, %v315
    %v317 = vrot.slane %v312, %v316
    %319 = vmatprep.subr.mxu0 0.0
    %320 = vmatpush1.msra.mxu0 %v296
    %321 = vmatprep.subr.mxu0 0.0
    %322 = vmatpush1.msra.mxu0 %v297
    %323 = vmatprep.subr.mxu0 0.0
    %324 = vmatpush1.msra.mxu0 %v298
    %325 = vmatprep.subr.mxu0 0.0
    %326 = vmatpush1.msra.mxu0 %v299
    %327 = vmatprep.subr.mxu0 0.0
    %328 = vmatpush1.msra.mxu0 %v300
    %329 = vmatprep.subr.mxu0 0.0
    %330 = vmatpush1.msra.mxu0 %v301
    %331 = vmatprep.subr.mxu0 0.0
    %332 = vmatpush1.msra.mxu0 %v302
    %333 = vmatprep.subr.mxu0 0.0
    %334 = vmatpush1.msra.mxu0 %v303
    %335 = vmatprep.subr.mxu0 0.0
    %336 = vmatpush1.msra.mxu0 %v304
    %337 = vmatprep.subr.mxu0 0.0
    %338 = vmatpush1.msra.mxu0 %v305
    %339 = vmatprep.subr.mxu0 0.0
    %340 = vmatpush1.msra.mxu0 %v306
    %341 = vmatprep.subr.mxu0 0.0
    %342 = vmatpush1.msra.mxu0 %v307
    %343 = vmatprep.subr.mxu0 0.0
    %344 = vmatpush1.msra.mxu0 %v308
    %345 = vmatprep.subr.mxu0 0.0
    %346 = vmatpush1.msra.mxu0 %v309
    %347 = vmatprep.subr.mxu0 0.0
    %348 = vmatpush1.msra.mxu0 %v310
    %349 = vmatprep.subr.mxu0 0.0
    %350 = vmatpush1.msra.mxu0 %v311
    %351 = vmatprep.subr.mxu0 0.0
    %352 = vmatpush1.msra.mxu0 0.0
    %353 = vmatprep.subr.mxu0 0.0
    %354 = vmatpush1.msra.mxu0 0.0
    %355 = vmatprep.subr.mxu0 0.0
    %356 = vmatpush1.msra.mxu0 0.0
    %357 = vmatprep.subr.mxu0 0.0
    %358 = vmatpush1.msra.mxu0 0.0
    %359 = vmatprep.subr.mxu0 0.0
    %360 = vmatpush1.msra.mxu0 0.0
    %361 = vmatprep.subr.mxu0 0.0
    %362 = vmatpush1.msra.mxu0 0.0
    %363 = vmatprep.subr.mxu0 0.0
    %364 = vmatpush1.msra.mxu0 0.0
    %365 = vmatprep.subr.mxu0 0.0
    %366 = vmatpush1.msra.mxu0 0.0
    %367 = vmatprep.subr.mxu0 0.0
    %368 = vmatpush1.msra.mxu0 0.0
    %369 = vmatprep.subr.mxu0 0.0
    %370 = vmatpush1.msra.mxu0 0.0
    %371 = vmatprep.subr.mxu0 0.0
    %372 = vmatpush1.msra.mxu0 0.0
    %373 = vmatprep.subr.mxu0 0.0
    %374 = vmatpush1.msra.mxu0 0.0
    %375 = vmatprep.subr.mxu0 0.0
    %376 = vmatpush1.msra.mxu0 0.0
    %377 = vmatprep.subr.mxu0 0.0
    %378 = vmatpush1.msra.mxu0 0.0
    %379 = vmatprep.subr.mxu0 0.0
    %380 = vmatpush1.msra.mxu0 0.0
    %381 = vmatprep.subr.mxu0 0.0
    %382 = vmatpush1.msra.mxu0 0.0
    %383 = vmatprep.mubr.f32.mxu0 0.0
    %384 = vmatmul.mubr.f32.gmra.mrb[0].mxu0 %v294
    %v385 = vpop.f32.mrb[0].mxu0
    %v386 = vadd.f32 %v317, %v385
    %v387 = vpop.f32.mrb[0].mxu0
    %388 = vdwg.mxu0
    %v389 = vmax.f32 %v386, 0.0
    %390 = vst [vmem:[#allocation15] sm:$0xff] %v389
    %v391 = vld [vmem:[#allocation10] sm:$0xff]
    %v392 = vld [vmem:[#allocation10 + $0x8] sm:$0xff]
    %v393 = vld [vmem:[#allocation10 + $0x10] sm:$0xff]
    %v394 = vld [vmem:[#allocation10 + $0x18] sm:$0xff]
    %v395 = vld [vmem:[#allocation10 + $0x20] sm:$0xff]
    %v396 = vld [vmem:[#allocation10 + $0x28] sm:$0xff]
    %v397 = vld [vmem:[#allocation10 + $0x30] sm:$0xff]
    %v398 = vld [vmem:[#allocation10 + $0x38] sm:$0xff]
    %v399 = vld [vmem:[#allocation10 + $0x40] sm:$0xff]
    %v400 = vld [vmem:[#allocation10 + $0x48] sm:$0xff]
    %v401 = vld [vmem:[#allocation10 + $0x50] sm:$0xff]
    %v402 = vld [vmem:[#allocation10 + $0x58] sm:$0xff]
    %v403 = vld [vmem:[#allocation10 + $0x60] sm:$0xff]
    %v404 = vld [vmem:[#allocation10 + $0x68] sm:$0xff]
    %v405 = vld [vmem:[#allocation10 + $0x70] sm:$0xff]
    %v406 = vld [vmem:[#allocation10 + $0x78] sm:$0xff]
    %v407 = vld [vmem:[%s8] sm:$0x1]
    %v409 = vlaneseq
    %v410 = vshrl.u32 %v409, 7
    %v411 = vsub.s32 0, %v410
    %v412 = vrot.slane %v407, %v411
    %414 = vmatprep.subr.mxu0 0.0
    %415 = vmatpush1.msra.mxu0 %v391
    %416 = vmatprep.subr.mxu0 0.0
    %417 = vmatpush1.msra.mxu0 %v392
    %418 = vmatprep.subr.mxu0 0.0
    %419 = vmatpush1.msra.mxu0 %v393
    %420 = vmatprep.subr.mxu0 0.0
    %421 = vmatpush1.msra.mxu0 %v394
    %422 = vmatprep.subr.mxu0 0.0
    %423 = vmatpush1.msra.mxu0 %v395
    %424 = vmatprep.subr.mxu0 0.0
    %425 = vmatpush1.msra.mxu0 %v396
    %426 = vmatprep.subr.mxu0 0.0
    %427 = vmatpush1.msra.mxu0 %v397
    %428 = vmatprep.subr.mxu0 0.0
    %429 = vmatpush1.msra.mxu0 %v398
    %430 = vmatprep.subr.mxu0 0.0
    %431 = vmatpush1.msra.mxu0 %v399
    %432 = vmatprep.subr.mxu0 0.0
    %433 = vmatpush1.msra.mxu0 %v400
    %434 = vmatprep.subr.mxu0 0.0
    %435 = vmatpush1.msra.mxu0 %v401
    %436 = vmatprep.subr.mxu0 0.0
    %437 = vmatpush1.msra.mxu0 %v402
    %438 = vmatprep.subr.mxu0 0.0
    %439 = vmatpush1.msra.mxu0 %v403
    %440 = vmatprep.subr.mxu0 0.0
    %441 = vmatpush1.msra.mxu0 %v404
    %442 = vmatprep.subr.mxu0 0.0
    %443 = vmatpush1.msra.mxu0 %v405
    %444 = vmatprep.subr.mxu0 0.0
    %445 = vmatpush1.msra.mxu0 %v406
    %446 = vmatprep.subr.mxu0 0.0
    %447 = vmatpush1.msra.mxu0 0.0
    %448 = vmatprep.subr.mxu0 0.0
    %449 = vmatpush1.msra.mxu0 0.0
    %450 = vmatprep.subr.mxu0 0.0
    %451 = vmatpush1.msra.mxu0 0.0
    %452 = vmatprep.subr.mxu0 0.0
    %453 = vmatpush1.msra.mxu0 0.0
    %454 = vmatprep.subr.mxu0 0.0
    %455 = vmatpush1.msra.mxu0 0.0
    %456 = vmatprep.subr.mxu0 0.0
    %457 = vmatpush1.msra.mxu0 0.0
    %458 = vmatprep.subr.mxu0 0.0
    %459 = vmatpush1.msra.mxu0 0.0
    %460 = vmatprep.subr.mxu0 0.0
    %461 = vmatpush1.msra.mxu0 0.0
    %462 = vmatprep.subr.mxu0 0.0
    %463 = vmatpush1.msra.mxu0 0.0
    %464 = vmatprep.subr.mxu0 0.0
    %465 = vmatpush1.msra.mxu0 0.0
    %466 = vmatprep.subr.mxu0 0.0
    %467 = vmatpush1.msra.mxu0 0.0
    %468 = vmatprep.subr.mxu0 0.0
    %469 = vmatpush1.msra.mxu0 0.0
    %470 = vmatprep.subr.mxu0 0.0
    %471 = vmatpush1.msra.mxu0 0.0
    %472 = vmatprep.subr.mxu0 0.0
    %473 = vmatpush1.msra.mxu0 0.0
    %474 = vmatprep.subr.mxu0 0.0
    %475 = vmatpush1.msra.mxu0 0.0
    %476 = vmatprep.subr.mxu0 0.0
    %477 = vmatpush1.msra.mxu0 0.0
    %478 = vmatprep.mubr.f32.mxu0 0.0
    %479 = vmatmul.mubr.f32.gmra.mrb[0].mxu0 %v389
    %v480 = vpop.f32.mrb[0].mxu0
    %v481 = vadd.f32 %v412, %v480
    %v482 = vpop.f32.mrb[0].mxu0
    %483 = vdwg.mxu0
    %484 = vst [vmem:[#allocation11] sm:$0xff] %v481
    // Predicated region
    $region58: #{tpu_custom_call.1} parent=1 // pred_check
      _
    $region59: #{tpu_custom_call.1} parent=1 // pred_check_branch
      %486 = sbr.rel (0) target = $region61
    $region60: #{tpu_custom_call.1} parent=1 // pred_region
      %s488 = ssub.s32 128, 128
      %489 = vsyncadd [#allocation4], %s488
      %s491 = sshll.u32 [#allocation11], 4
      %s492 = int_to_ptr.vmem [resolvable:$true] %s491
      %494 = dma.vmem_to_hbm [thread:$0]  %s492, 128, %s9, [#allocation4]
    $region61: #{tpu_custom_call.1} parent=1 // pred_fallthru
      _
    // Predicated region
    $region62: #{tpu_custom_call.1} parent=1 // pred_check
      _
    $region63: #{tpu_custom_call.1} parent=1 // pred_check_branch
      %496 = sbr.rel (0) target = $region65
    $region64: #{tpu_custom_call.1} parent=1 // pred_region
      %s498 = ssub.s32 128, 128
      %499 = vsyncadd [#allocation13], %s498
      %s501 = sshll.u32 [#allocation12], 4
      %s502 = int_to_ptr.vmem [resolvable:$true] %s501
      %504 = dma.vmem_to_hbm [thread:$0]  %s502, 128, %s10, [#allocation13]
    $region65: #{tpu_custom_call.1} parent=1 // pred_fallthru
      _
    // Predicated region
    $region66: #{tpu_custom_call.1} parent=1 // pred_check
      _
    $region67: #{tpu_custom_call.1} parent=1 // pred_check_branch
      %506 = sbr.rel (0) target = $region69
    $region68: #{tpu_custom_call.1} parent=1 // pred_region
      %s508 = ssub.s32 128, 128
      %509 = vsyncadd [#allocation13], %s508
      %s511 = sshll.u32 [#allocation14], 4
      %s512 = int_to_ptr.vmem [resolvable:$true] %s511
      %514 = dma.vmem_to_hbm [thread:$0]  %s512, 128, %s11, [#allocation13]
    $region69: #{tpu_custom_call.1} parent=1 // pred_fallthru
      _
    // Predicated region
    $region70: #{tpu_custom_call.1} parent=1 // pred_check
      _
    $region71: #{tpu_custom_call.1} parent=1 // pred_check_branch
      %516 = sbr.rel (0) target = $region73
    $region72: #{tpu_custom_call.1} parent=1 // pred_region
      %s518 = ssub.s32 128, 128
      %519 = vsyncadd [#allocation16], %s518
      %s521 = sshll.u32 [#allocation15], 4
      %s522 = int_to_ptr.vmem [resolvable:$true] %s521
      %524 = dma.vmem_to_hbm [thread:$0]  %s522, 128, %s12, [#allocation16]
    $region73: #{tpu_custom_call.1} parent=1 // pred_fallthru
      _
    // Predicated region
    $region74: #{tpu_custom_call.1} parent=1 // pred_check
      _
    $region75: #{tpu_custom_call.1} parent=1 // pred_check_branch
      %526 = sbr.rel (0) target = $region77
    $region76: #{tpu_custom_call.1} parent=1 // pred_region
      %527 = dma.done [#allocation4], 128
    $region77: #{tpu_custom_call.1} parent=1 // pred_fallthru
      _
    // Predicated region
    $region78: #{tpu_custom_call.1} parent=1 // pred_check
      _
    $region79: #{tpu_custom_call.1} parent=1 // pred_check_branch
      %529 = sbr.rel (0) target = $region81
    $region80: #{tpu_custom_call.1} parent=1 // pred_region
      %530 = dma.done [#allocation13], 128
    $region81: #{tpu_custom_call.1} parent=1 // pred_fallthru
      _
    // Predicated region
    $region82: #{tpu_custom_call.1} parent=1 // pred_check
      _
    $region83: #{tpu_custom_call.1} parent=1 // pred_check_branch
      %532 = sbr.rel (0) target = $region85
    $region84: #{tpu_custom_call.1} parent=1 // pred_region
      %533 = dma.done [#allocation13], 128
    $region85: #{tpu_custom_call.1} parent=1 // pred_fallthru
      _
    // Predicated region
    $region86: #{tpu_custom_call.1} parent=1 // pred_check
      _
    $region87: #{tpu_custom_call.1} parent=1 // pred_check_branch
      %535 = sbr.rel (0) target = $region89
    $region88: #{tpu_custom_call.1} parent=1 // pred_region
      %536 = dma.done [#allocation16], 128
    $region89: #{tpu_custom_call.1} parent=1 // pred_fallthru
      _
    %537 = vsyncpa [#allocation3], 1
    %538 = vsyncpa [#allocation6], 1
    %539 = vsyncpa [#allocation9], 1
    %540 = vsyncpa [#allocation4], 1
    %541 = vsyncpa [#allocation13], 1
    %542 = vsyncpa [#allocation16], 1

</llo_original>
